<compile_context>
chip_gen: v6e
topology: v6e:2x2x1
jax: 0.10.0
libtpu: 0.0.40
codegen_flags: <defaults>
</compile_context>

<pallas_src>
import functools

import jax
import jax.numpy as jnp
from jax.experimental import pallas as pl
from jax.experimental.pallas import tpu as pltpu


# ------------------------------ helpers ------------------------------------

def _pick_row_tile(m, target=512):
    """Largest row-tile (multiple of 8) that divides m, capped at `target`."""
    for t in (target, 256, 128, 64, 32, 16, 8):
        if t <= m and m % t == 0:
            return t
    return m


def _full_spec(shape):
    """BlockSpec that keeps a (small) parameter fully resident in VMEM."""
    nd = len(shape)
    return pl.BlockSpec(shape, lambda *args, _nd=nd: (0,) * _nd)


_COMPILER_PARAMS = pltpu.CompilerParams(
    dimension_semantics=("parallel",),
    vmem_limit_bytes=32 * 1024 * 1024,   # safe on v5e/v6e/v7x
)


# --------------------------- Pallas kernels ---------------------------------

def _stem_expand_kernel(p_ref, sw_ref, sb_ref, ew_ref, eb_ref, stem_ref, h_ref):
    """Fused: stem 3x3 conv (im2col matmul) + BN + SiLU, then expand 1x1 + BN + SiLU."""
    # stem: (TM, K_pad) bf16 @ (K_pad, C0) bf16 -> f32
    s = jnp.dot(p_ref[...], sw_ref[...], preferred_element_type=jnp.float32)
    s = s + sb_ref[...]
    s = s * jax.nn.sigmoid(s)                       # SiLU in f32
    stem_ref[...] = s.astype(stem_ref.dtype)
    # expand 1x1: the 16-wide stem intermediate never hits HBM for this matmul
    h = jnp.dot(s.astype(ew_ref.dtype), ew_ref[...],
                preferred_element_type=jnp.float32)
    h = h + eb_ref[...]
    h = h * jax.nn.sigmoid(h)
    h_ref[...] = h.astype(h_ref.dtype)


def stem_expand(patches, stem_w, stem_b, exp_w, exp_b):
    M, Kp = patches.shape
    C0 = stem_w.shape[1]
    Ce = exp_w.shape[1]
    TM = _pick_row_tile(M)
    return pl.pallas_call(
        _stem_expand_kernel,
        out_shape=(jax.ShapeDtypeStruct((M, C0), jnp.bfloat16),
                   jax.ShapeDtypeStruct((M, Ce), jnp.bfloat16)),
        grid=(M // TM,),
        in_specs=[
            pl.BlockSpec((TM, Kp), lambda i: (i, 0)),
            _full_spec(stem_w.shape),
            _full_spec(stem_b.shape),
            _full_spec(exp_w.shape),
            _full_spec(exp_b.shape),
        ],
        out_specs=(pl.BlockSpec((TM, C0), lambda i: (i, 0)),
                   pl.BlockSpec((TM, Ce), lambda i: (i, 0))),
        compiler_params=_COMPILER_PARAMS,
    )(patches, stem_w, stem_b, exp_w, exp_b)


def _mbconv_head_kernel(hpad_ref, stem_ref, dw_w_ref, dw_b_ref,
                        se_w1_ref, se_b1_ref, se_w2_ref, se_b2_ref,
                        proj_w_ref, proj_b_ref, head_w_ref, head_b_ref,
                        fc_w_ref, fc_b_ref, out_ref, *, Ho, Wo):
    """Per-image fused MBConv (dwconv + SE + project + residual) + head + GAP + FC."""
    Ce = hpad_ref.shape[-1]
    hp = hpad_ref[0].astype(jnp.float32)               # (Ho+2, Wo+2, Ce) halo block

    # --- depthwise 3x3 (stride-1, pad-1): 9 taps generated in-VMEM via slices ---
    acc = jnp.zeros((Ho, Wo, Ce), jnp.float32)
    for kh in range(3):
        for kw in range(3):
            tap = hp[kh:kh + Ho, kw:kw + Wo, :]
            w_t = dw_w_ref[kh * 3 + kw].reshape(1, 1, Ce)
            acc = acc + tap * w_t
    acc = acc + dw_b_ref[...].reshape(1, 1, Ce)
    hdw = (acc * jax.nn.sigmoid(acc)).reshape(Ho * Wo, Ce)   # SiLU

    # --- squeeze-and-excite: GAP + two tiny FCs + sigmoid gate, all in VMEM ---
    pooled = jnp.mean(hdw, axis=0, keepdims=True)      # (1, Ce)
    s1 = jnp.dot(pooled, se_w1_ref[...], preferred_element_type=jnp.float32)
    s1 = s1 + se_b1_ref[...]
    s1 = s1 * jax.nn.sigmoid(s1)
    s2 = jnp.dot(s1, se_w2_ref[...], preferred_element_type=jnp.float32)
    s2 = s2 + se_b2_ref[...]
    hse = hdw * jax.nn.sigmoid(s2)                     # channel gate

    # --- project 1x1 + folded BN, residual add with the stem activation ---
    proj = jnp.dot(hse.astype(proj_w_ref.dtype), proj_w_ref[...],
                   preferred_element_type=jnp.float32) + proj_b_ref[...]
    res = proj + stem_ref[0].astype(jnp.float32)       # (Ho*Wo, C0)

    # --- head 1x1 + folded BN + SiLU ---
    hd = jnp.dot(res.astype(head_w_ref.dtype), head_w_ref[...],
                 preferred_element_type=jnp.float32) + head_b_ref[...]
    hd = hd * jax.nn.sigmoid(hd)                       # (Ho*Wo, Chead)

    # --- global average pool + feature projection ---
    feat = jnp.mean(hd, axis=0, keepdims=True)         # (1, Chead)
    out = jnp.dot(feat, fc_w_ref[...],
                  preferred_element_type=jnp.float32) + fc_b_ref[...]
    out_ref[...] = out.reshape(out_ref.shape).astype(out_ref.dtype)


def mbconv_head(hpad, stem3, param_list, feature_size, Ho, Wo):
    N, Hp, Wp, Ce = hpad.shape
    C0 = stem3.shape[-1]
    operands = (hpad, stem3) + tuple(param_list)
    in_specs = [pl.BlockSpec((1, Hp, Wp, Ce), lambda b: (b, 0, 0, 0)),
                pl.BlockSpec((1, Ho * Wo, C0), lambda b: (b, 0, 0))]
    in_specs += [_full_spec(op.shape) for op in operands[2:]]
    out = pl.pallas_call(
        functools.partial(_mbconv_head_kernel, Ho=Ho, Wo=Wo),
        out_shape=jax.ShapeDtypeStruct((N, 1, feature_size), jnp.float32),
        grid=(N,),
        in_specs=in_specs,
        out_specs=pl.BlockSpec((1, 1, feature_size), lambda b: (b, 0, 0)),
        compiler_params=_COMPILER_PARAMS,
    )(*operands)
    return out.reshape(N, feature_size)


# ------------------------------- JAX glue -----------------------------------

def im2col(x, ksize, stride, pad, k_pad_to=None):
    """x: (N,H,W,C) -> patches (N*Ho*Wo, ksize*ksize*C) ordered (kh, kw, C)."""
    N, H, W, C = x.shape
    xp = jnp.pad(x, ((0, 0), (pad, pad), (pad, pad), (0, 0)))
    Ho = (H + 2 * pad - ksize) // stride + 1
    Wo = (W + 2 * pad - ksize) // stride + 1
    taps = []
    for kh in range(ksize):
        for kw in range(ksize):
            taps.append(xp[:, kh:kh + stride * Ho:stride,
                           kw:kw + stride * Wo:stride, :])
    p = jnp.stack(taps, axis=-2)                       # (N, Ho, Wo, k*k, C)
    p = p.reshape(N * Ho * Wo, ksize * ksize * C)
    if k_pad_to is not None and p.shape[1] < k_pad_to:
        p = jnp.pad(p, ((0, 0), (0, k_pad_to - p.shape[1])))
    return p, Ho, Wo


def fold_bn(w, bn, eps=1e-3):
    """Fold eval-mode BatchNorm into the preceding conv (output-channel last)."""
    gamma, beta, mean, var = bn
    scale = gamma / jnp.sqrt(var + eps)
    return w * scale, beta - mean * scale


def init_params(key, cin=3, c0=16, expand=4, se_ratio=4, chead=64,
                feature_size=32):
    ce = c0 * expand
    cse = c0 // se_ratio
    keys = jax.random.split(key, 14)

    def w_init(k, shape, fan_in):
        return jax.random.normal(k, shape, jnp.float32) / jnp.sqrt(float(fan_in))

    def bn_init(k, c):
        k1, k2 = jax.random.split(k)
        return (1.0 + 0.1 * jax.random.normal(k1, (c,), jnp.float32),
                0.1 * jax.random.normal(k2, (c,), jnp.float32),
                jnp.zeros((c,), jnp.float32),
                jnp.ones((c,), jnp.float32))

    return {
        "stem_w": w_init(keys[0], (3, 3, cin, c0), 9 * cin),   # HWIO
        "stem_bn": bn_init(keys[1], c0),
        "exp_w": w_init(keys[2], (c0, ce), c0),                # 1x1 conv as matmul
        "exp_bn": bn_init(keys[3], ce),
        "dw_w": w_init(keys[4], (9, 1, ce), 9),                # depthwise taps
        "dw_bn": bn_init(keys[5], ce),
        "se_w1": w_init(keys[6], (ce, cse), ce),
        "se_b1": jnp.zeros((cse,), jnp.float32),
        "se_w2": w_init(keys[7], (cse, ce), cse),
        "se_b2": jnp.zeros((ce,), jnp.float32),
        "proj_w": w_init(keys[8], (ce, c0), ce),
        "proj_bn": bn_init(keys[9], c0),
        "head_w": w_init(keys[10], (c0, chead), c0),
        "head_bn": bn_init(keys[11], chead),
        "fc_w": w_init(keys[12], (chead, feature_size), chead),
        "fc_b": 0.01 * jax.random.normal(keys[13], (feature_size,), jnp.float32),
    }


def efficientnet_backbone_forward(x_nchw, params, feature_size):
    """Mirrors EfficientNetBackbone.forward(x) -> efficientNet(x)."""
    # NCHW (PyTorch convention) -> NHWC for the kernels.
    x = jnp.transpose(x_nchw, (0, 2, 3, 1)).astype(jnp.float32)
    N = x.shape[0]

    # --- Kernel A: stem 3x3 s2 conv + BN + SiLU  fused with  expand 1x1 + BN + SiLU ---
    sw, sb = fold_bn(params["stem_w"], params["stem_bn"])
    C0 = sw.shape[-1]
    ew, eb = fold_bn(params["exp_w"], params["exp_bn"])
    Ce = ew.shape[-1]
    K_PAD = 32                                 # pad im2col K 27 -> 32 (clean vreg packing)
    patches, Ho, Wo = im2col(x, ksize=3, stride=2, pad=1, k_pad_to=K_PAD)
    sw_flat = sw.reshape(-1, C0)
    sw_flat = jnp.pad(sw_flat, ((0, K_PAD - sw_flat.shape[0]), (0, 0)))
    stem, h = stem_expand(patches.astype(jnp.bfloat16),
                          sw_flat.astype(jnp.bfloat16), sb.reshape(1, C0),
                          ew.astype(jnp.bfloat16), eb.reshape(1, Ce))

    # Zero-padded halo block (single copy) for the in-kernel 3x3 depthwise taps.
    # NOTE: kernel B assumes a 3x3, stride-1, pad-1 depthwise conv on (Ho, Wo).
    hpad = jnp.pad(h.reshape(N, Ho, Wo, Ce), ((0, 0), (1, 1), (1, 1), (0, 0)))
    stem3 = stem.reshape(N, Ho * Wo, C0)

    # --- Kernel B: fused dwconv + SE + project + residual + head + GAP + FC ---
    dw_w, dw_b = fold_bn(params["dw_w"], params["dw_bn"])
    pw, pb = fold_bn(params["proj_w"], params["proj_bn"])
    hw, hb = fold_bn(params["head_w"], params["head_bn"])
    Chead = hw.shape[-1]
    param_list = [
        dw_w, dw_b.reshape(1, Ce),
        params["se_w1"], params["se_b1"].reshape(1, -1),
        params["se_w2"], params["se_b2"].reshape(1, Ce),
        pw.astype(jnp.bfloat16), pb.reshape(1, C0),
        hw.astype(jnp.bfloat16), hb.reshape(1, Chead),
        params["fc_w"], params["fc_b"].reshape(1, -1),
    ]
    return mbconv_head(hpad, stem3, param_list, feature_size, Ho, Wo)


if __name__ == "__main__":
    key = jax.random.PRNGKey(0)
    pkey, xkey = jax.random.split(key)
    feature_size = 32
    params = init_params(pkey, feature_size=feature_size)

    # PyTorch-style NCHW input.
    x = jax.random.normal(xkey, (2, 3, 16, 16), jnp.float32)

    fwd = jax.jit(functools.partial(efficientnet_backbone_forward,
                                    params=params, feature_size=feature_size))
    out = fwd(x)
    jax.block_until_ready(out)
    assert out.shape == (2, feature_size), out.shape
    assert bool(jnp.all(jnp.isfinite(out)))
    print("KERNEL_OK")
</pallas_src>

<mosaic_0001>
module attributes {stable_mosaic.version = 11 : i64} {
  func.func @_stem_expand_kernel(%arg0: i32, %arg1: memref<128x32xbf16, #tpu.memory_space<vmem>>, %arg2: memref<32x16xbf16, #tpu.memory_space<vmem>>, %arg3: memref<1x16xf32, #tpu.memory_space<vmem>>, %arg4: memref<16x64xbf16, #tpu.memory_space<vmem>>, %arg5: memref<1x64xf32, #tpu.memory_space<vmem>>, %arg6: memref<128x16xbf16, #tpu.memory_space<vmem>>, %arg7: memref<128x64xbf16, #tpu.memory_space<vmem>>) attributes {dimension_semantics = [#tpu.dimension_semantics<parallel>], iteration_bounds = array<i64: 1>, scalar_prefetch = 0 : i64, scratch_operands = 0 : i64, tpu.core_type = #tpu.core_type<tc>, window_params = [{transform_indices = @transform_0, window_bounds = array<i64: 128, 32>}, {pipeline_mode = #tpu.pipeline_mode<synchronous>, transform_indices = @transform_1, window_bounds = array<i64: 32, 16>}, {pipeline_mode = #tpu.pipeline_mode<synchronous>, transform_indices = @transform_2, window_bounds = array<i64: 1, 16>}, {pipeline_mode = #tpu.pipeline_mode<synchronous>, transform_indices = @transform_3, window_bounds = array<i64: 16, 64>}, {pipeline_mode = #tpu.pipeline_mode<synchronous>, transform_indices = @transform_4, window_bounds = array<i64: 1, 64>}, {transform_indices = @transform_5, window_bounds = array<i64: 128, 16>}, {transform_indices = @transform_6, window_bounds = array<i64: 128, 64>}]} {
    %c0 = arith.constant 0 : index
    %c0_0 = arith.constant 0 : index
    %0 = vector.load %arg1[%c0, %c0_0] : memref<128x32xbf16, #tpu.memory_space<vmem>>, vector<128x32xbf16>
    %c0_1 = arith.constant 0 : index
    %c0_2 = arith.constant 0 : index
    %1 = vector.load %arg2[%c0_1, %c0_2] : memref<32x16xbf16, #tpu.memory_space<vmem>>, vector<32x16xbf16>
    %cst = arith.constant dense<0.000000e+00> : vector<128x16xf32>
    %2 = tpu.matmul %0, %1, %cst {dimension_numbers = #tpu.dot_dimension_numbers<[1], [0], [0], [1], [0, 0, 1, 1], [], []>} : vector<128x32xbf16>, vector<32x16xbf16>, vector<128x16xf32> -> vector<128x16xf32>
    %c0_3 = arith.constant 0 : index
    %c0_4 = arith.constant 0 : index
    %3 = vector.load %arg3[%c0_3, %c0_4] : memref<1x16xf32, #tpu.memory_space<vmem>>, vector<1x16xf32>
    %4 = vector.broadcast %3 : vector<1x16xf32> to vector<128x16xf32>
    %5 = arith.addf %2, %4 : vector<128x16xf32>
    %6 = arith.negf %5 : vector<128x16xf32>
    %7 = math.exp %6 : vector<128x16xf32>
    %cst_5 = arith.constant 1.000000e+00 : f32
    %8 = vector.broadcast %cst_5 : f32 to vector<128x16xf32>
    %9 = arith.addf %8, %7 : vector<128x16xf32>
    %10 = arith.divf %8, %9 : vector<128x16xf32>
    %11 = arith.mulf %5, %10 : vector<128x16xf32>
    %12 = arith.truncf %11 : vector<128x16xf32> to vector<128x16xbf16>
    %c0_6 = arith.constant 0 : index
    %c0_7 = arith.constant 0 : index
    %13 = vector.load %arg6[%c0_6, %c0_7] : memref<128x16xbf16, #tpu.memory_space<vmem>>, vector<128x16xbf16>
    tpu.vector_store %arg6[%c0_6, %c0_7], %12 {strides = array<i32>} : memref<128x16xbf16, #tpu.memory_space<vmem>>, vector<128x16xbf16>,
    %14 = arith.truncf %11 : vector<128x16xf32> to vector<128x16xbf16>
    %c0_8 = arith.constant 0 : index
    %c0_9 = arith.constant 0 : index
    %15 = vector.load %arg4[%c0_8, %c0_9] : memref<16x64xbf16, #tpu.memory_space<vmem>>, vector<16x64xbf16>
    %cst_10 = arith.constant dense<0.000000e+00> : vector<128x64xf32>
    %16 = tpu.matmul %14, %15, %cst_10 {dimension_numbers = #tpu.dot_dimension_numbers<[1], [0], [0], [1], [0, 0, 1, 1], [], []>} : vector<128x16xbf16>, vector<16x64xbf16>, vector<128x64xf32> -> vector<128x64xf32>
    %c0_11 = arith.constant 0 : index
    %c0_12 = arith.constant 0 : index
    %17 = vector.load %arg5[%c0_11, %c0_12] : memref<1x64xf32, #tpu.memory_space<vmem>>, vector<1x64xf32>
    %18 = vector.broadcast %17 : vector<1x64xf32> to vector<128x64xf32>
    %19 = arith.addf %16, %18 : vector<128x64xf32>
    %20 = arith.negf %19 : vector<128x64xf32>
    %21 = math.exp %20 : vector<128x64xf32>
    %cst_13 = arith.constant 1.000000e+00 : f32
    %22 = vector.broadcast %cst_13 : f32 to vector<128x64xf32>
    %23 = arith.addf %22, %21 : vector<128x64xf32>
    %24 = arith.divf %22, %23 : vector<128x64xf32>
    %25 = arith.mulf %19, %24 : vector<128x64xf32>
    %26 = arith.truncf %25 : vector<128x64xf32> to vector<128x64xbf16>
    %c0_14 = arith.constant 0 : index
    %c0_15 = arith.constant 0 : index
    %27 = vector.load %arg7[%c0_14, %c0_15] : memref<128x64xbf16, #tpu.memory_space<vmem>>, vector<128x64xbf16>
    tpu.vector_store %arg7[%c0_14, %c0_15], %26 {strides = array<i32>} : memref<128x64xbf16, #tpu.memory_space<vmem>>, vector<128x64xbf16>,
    return
  }
  func.func @transform_0(%arg0: i32) -> (i32, i32) {
    %c0_i32 = arith.constant 0 : i32
    %c0_i32_0 = arith.constant 0 : i32
    return %arg0, %c0_i32 : i32, i32
  }
  func.func @transform_1(%arg0: i32) -> (i32, i32) {
    %c0_i32 = arith.constant 0 : i32
    %c0_i32_0 = arith.constant 0 : i32
    %c0_i32_1 = arith.constant 0 : i32
    return %c0_i32, %c0_i32_0 : i32, i32
  }
  func.func @transform_2(%arg0: i32) -> (i32, i32) {
    %c0_i32 = arith.constant 0 : i32
    %c0_i32_0 = arith.constant 0 : i32
    %c0_i32_1 = arith.constant 0 : i32
    return %c0_i32, %c0_i32_0 : i32, i32
  }
  func.func @transform_3(%arg0: i32) -> (i32, i32) {
    %c0_i32 = arith.constant 0 : i32
    %c0_i32_0 = arith.constant 0 : i32
    %c0_i32_1 = arith.constant 0 : i32
    return %c0_i32, %c0_i32_0 : i32, i32
  }
  func.func @transform_4(%arg0: i32) -> (i32, i32) {
    %c0_i32 = arith.constant 0 : i32
    %c0_i32_0 = arith.constant 0 : i32
    %c0_i32_1 = arith.constant 0 : i32
    return %c0_i32, %c0_i32_0 : i32, i32
  }
  func.func @transform_5(%arg0: i32) -> (i32, i32) {
    %c0_i32 = arith.constant 0 : i32
    %c0_i32_0 = arith.constant 0 : i32
    return %arg0, %c0_i32 : i32, i32
  }
  func.func @transform_6(%arg0: i32) -> (i32, i32) {
    %c0_i32 = arith.constant 0 : i32
    %c0_i32_0 = arith.constant 0 : i32
    return %arg0, %c0_i32 : i32, i32
  }
}

module attributes {stable_mosaic.version = 11 : i64} {
  func.func @_mbconv_head_kernel(%arg0: i32, %arg1: memref<1x10x10x64xbf16, #tpu.memory_space<vmem>>, %arg2: memref<1x64x16xbf16, #tpu.memory_space<vmem>>, %arg3: memref<9x1x64xf32, #tpu.memory_space<vmem>>, %arg4: memref<1x64xf32, #tpu.memory_space<vmem>>, %arg5: memref<64x4xf32, #tpu.memory_space<vmem>>, %arg6: memref<1x4xf32, #tpu.memory_space<vmem>>, %arg7: memref<4x64xf32, #tpu.memory_space<vmem>>, %arg8: memref<1x64xf32, #tpu.memory_space<vmem>>, %arg9: memref<64x16xbf16, #tpu.memory_space<vmem>>, %arg10: memref<1x16xf32, #tpu.memory_space<vmem>>, %arg11: memref<16x64xbf16, #tpu.memory_space<vmem>>, %arg12: memref<1x64xf32, #tpu.memory_space<vmem>>, %arg13: memref<64x32xf32, #tpu.memory_space<vmem>>, %arg14: memref<1x32xf32, #tpu.memory_space<vmem>>, %arg15: memref<1x1x32xf32, #tpu.memory_space<vmem>>) attributes {dimension_semantics = [#tpu.dimension_semantics<parallel>], iteration_bounds = array<i64: 2>, scalar_prefetch = 0 : i64, scratch_operands = 0 : i64, tpu.core_type = #tpu.core_type<tc>, window_params = [{transform_indices = @transform_0, window_bounds = array<i64: 1, 10, 10, 64>}, {transform_indices = @transform_1, window_bounds = array<i64: 1, 64, 16>}, {pipeline_mode = #tpu.pipeline_mode<synchronous>, transform_indices = @transform_2, window_bounds = array<i64: 9, 1, 64>}, {pipeline_mode = #tpu.pipeline_mode<synchronous>, transform_indices = @transform_3, window_bounds = array<i64: 1, 64>}, {pipeline_mode = #tpu.pipeline_mode<synchronous>, transform_indices = @transform_4, window_bounds = array<i64: 64, 4>}, {pipeline_mode = #tpu.pipeline_mode<synchronous>, transform_indices = @transform_5, window_bounds = array<i64: 1, 4>}, {pipeline_mode = #tpu.pipeline_mode<synchronous>, transform_indices = @transform_6, window_bounds = array<i64: 4, 64>}, {pipeline_mode = #tpu.pipeline_mode<synchronous>, transform_indices = @transform_7, window_bounds = array<i64: 1, 64>}, {pipeline_mode = #tpu.pipeline_mode<synchronous>, transform_indices = @transform_8, window_bounds = array<i64: 64, 16>}, {pipeline_mode = #tpu.pipeline_mode<synchronous>, transform_indices = @transform_9, window_bounds = array<i64: 1, 16>}, {pipeline_mode = #tpu.pipeline_mode<synchronous>, transform_indices = @transform_10, window_bounds = array<i64: 16, 64>}, {pipeline_mode = #tpu.pipeline_mode<synchronous>, transform_indices = @transform_11, window_bounds = array<i64: 1, 64>}, {pipeline_mode = #tpu.pipeline_mode<synchronous>, transform_indices = @transform_12, window_bounds = array<i64: 64, 32>}, {pipeline_mode = #tpu.pipeline_mode<synchronous>, transform_indices = @transform_13, window_bounds = array<i64: 1, 32>}, {transform_indices = @transform_14, window_bounds = array<i64: 1, 1, 32>}]} {
    %c0 = arith.constant 0 : index
    %c0_0 = arith.constant 0 : index
    %c0_1 = arith.constant 0 : index
    %c0_2 = arith.constant 0 : index
    %0 = vector.load %arg1[%c0, %c0_0, %c0_1, %c0_2] : memref<1x10x10x64xbf16, #tpu.memory_space<vmem>>, vector<1x10x10x64xbf16>
    %1 = vector.shape_cast %0 : vector<1x10x10x64xbf16> to vector<10x10x64xbf16>
    %2 = arith.extf %1 : vector<10x10x64xbf16> to vector<10x10x64xf32>
    %cst = arith.constant 0.000000e+00 : f32
    %3 = vector.broadcast %cst : f32 to vector<8x8x64xf32>
    %4 = vector.extract_strided_slice %2 {offsets = [0, 0, 0], sizes = [8, 8, 64], strides = [1, 1, 1]} : vector<10x10x64xf32> to vector<8x8x64xf32>
    %c0_3 = arith.constant 0 : index
    %c0_4 = arith.constant 0 : index
    %c0_5 = arith.constant 0 : index
    %5 = vector.load %arg3[%c0_3, %c0_4, %c0_5] : memref<9x1x64xf32, #tpu.memory_space<vmem>>, vector<1x1x64xf32>
    %6 = vector.shape_cast %5 : vector<1x1x64xf32> to vector<1x64xf32>
    %7 = vector.shape_cast %6 : vector<1x64xf32> to vector<1x1x64xf32>
    %8 = vector.broadcast %7 : vector<1x1x64xf32> to vector<8x8x64xf32>
    %9 = arith.mulf %4, %8 : vector<8x8x64xf32>
    %10 = arith.addf %3, %9 : vector<8x8x64xf32>
    %11 = vector.extract_strided_slice %2 {offsets = [0, 1, 0], sizes = [8, 8, 64], strides = [1, 1, 1]} : vector<10x10x64xf32> to vector<8x8x64xf32>
    %c1 = arith.constant 1 : index
    %c0_6 = arith.constant 0 : index
    %c0_7 = arith.constant 0 : index
    %12 = vector.load %arg3[%c1, %c0_6, %c0_7] : memref<9x1x64xf32, #tpu.memory_space<vmem>>, vector<1x1x64xf32>
    %13 = vector.shape_cast %12 : vector<1x1x64xf32> to vector<1x64xf32>
    %14 = vector.shape_cast %13 : vector<1x64xf32> to vector<1x1x64xf32>
    %15 = vector.broadcast %14 : vector<1x1x64xf32> to vector<8x8x64xf32>
    %16 = arith.mulf %11, %15 : vector<8x8x64xf32>
    %17 = arith.addf %10, %16 : vector<8x8x64xf32>
    %18 = vector.extract_strided_slice %2 {offsets = [0, 2, 0], sizes = [8, 8, 64], strides = [1, 1, 1]} : vector<10x10x64xf32> to vector<8x8x64xf32>
    %c2 = arith.constant 2 : index
    %c0_8 = arith.constant 0 : index
    %c0_9 = arith.constant 0 : index
    %19 = vector.load %arg3[%c2, %c0_8, %c0_9] : memref<9x1x64xf32, #tpu.memory_space<vmem>>, vector<1x1x64xf32>
    %20 = vector.shape_cast %19 : vector<1x1x64xf32> to vector<1x64xf32>
    %21 = vector.shape_cast %20 : vector<1x64xf32> to vector<1x1x64xf32>
    %22 = vector.broadcast %21 : vector<1x1x64xf32> to vector<8x8x64xf32>
    %23 = arith.mulf %18, %22 : vector<8x8x64xf32>
    %24 = arith.addf %17, %23 : vector<8x8x64xf32>
    %25 = vector.extract_strided_slice %2 {offsets = [1, 0, 0], sizes = [8, 8, 64], strides = [1, 1, 1]} : vector<10x10x64xf32> to vector<8x8x64xf32>
    %c3 = arith.constant 3 : index
    %c0_10 = arith.constant 0 : index
    %c0_11 = arith.constant 0 : index
    %26 = vector.load %arg3[%c3, %c0_10, %c0_11] : memref<9x1x64xf32, #tpu.memory_space<vmem>>, vector<1x1x64xf32>
    %27 = vector.shape_cast %26 : vector<1x1x64xf32> to vector<1x64xf32>
    %28 = vector.shape_cast %27 : vector<1x64xf32> to vector<1x1x64xf32>
    %29 = vector.broadcast %28 : vector<1x1x64xf32> to vector<8x8x64xf32>
    %30 = arith.mulf %25, %29 : vector<8x8x64xf32>
    %31 = arith.addf %24, %30 : vector<8x8x64xf32>
    %32 = vector.extract_strided_slice %2 {offsets = [1, 1, 0], sizes = [8, 8, 64], strides = [1, 1, 1]} : vector<10x10x64xf32> to vector<8x8x64xf32>
    %c4 = arith.constant 4 : index
    %c0_12 = arith.constant 0 : index
    %c0_13 = arith.constant 0 : index
    %33 = vector.load %arg3[%c4, %c0_12, %c0_13] : memref<9x1x64xf32, #tpu.memory_space<vmem>>, vector<1x1x64xf32>
    %34 = vector.shape_cast %33 : vector<1x1x64xf32> to vector<1x64xf32>
    %35 = vector.shape_cast %34 : vector<1x64xf32> to vector<1x1x64xf32>
    %36 = vector.broadcast %35 : vector<1x1x64xf32> to vector<8x8x64xf32>
    %37 = arith.mulf %32, %36 : vector<8x8x64xf32>
    %38 = arith.addf %31, %37 : vector<8x8x64xf32>
    %39 = vector.extract_strided_slice %2 {offsets = [1, 2, 0], sizes = [8, 8, 64], strides = [1, 1, 1]} : vector<10x10x64xf32> to vector<8x8x64xf32>
    %c5 = arith.constant 5 : index
    %c0_14 = arith.constant 0 : index
    %c0_15 = arith.constant 0 : index
    %40 = vector.load %arg3[%c5, %c0_14, %c0_15] : memref<9x1x64xf32, #tpu.memory_space<vmem>>, vector<1x1x64xf32>
    %41 = vector.shape_cast %40 : vector<1x1x64xf32> to vector<1x64xf32>
    %42 = vector.shape_cast %41 : vector<1x64xf32> to vector<1x1x64xf32>
    %43 = vector.broadcast %42 : vector<1x1x64xf32> to vector<8x8x64xf32>
    %44 = arith.mulf %39, %43 : vector<8x8x64xf32>
    %45 = arith.addf %38, %44 : vector<8x8x64xf32>
    %46 = vector.extract_strided_slice %2 {offsets = [2, 0, 0], sizes = [8, 8, 64], strides = [1, 1, 1]} : vector<10x10x64xf32> to vector<8x8x64xf32>
    %c6 = arith.constant 6 : index
    %c0_16 = arith.constant 0 : index
    %c0_17 = arith.constant 0 : index
    %47 = vector.load %arg3[%c6, %c0_16, %c0_17] : memref<9x1x64xf32, #tpu.memory_space<vmem>>, vector<1x1x64xf32>
    %48 = vector.shape_cast %47 : vector<1x1x64xf32> to vector<1x64xf32>
    %49 = vector.shape_cast %48 : vector<1x64xf32> to vector<1x1x64xf32>
    %50 = vector.broadcast %49 : vector<1x1x64xf32> to vector<8x8x64xf32>
    %51 = arith.mulf %46, %50 : vector<8x8x64xf32>
    %52 = arith.addf %45, %51 : vector<8x8x64xf32>
    %53 = vector.extract_strided_slice %2 {offsets = [2, 1, 0], sizes = [8, 8, 64], strides = [1, 1, 1]} : vector<10x10x64xf32> to vector<8x8x64xf32>
    %c7 = arith.constant 7 : index
    %c0_18 = arith.constant 0 : index
    %c0_19 = arith.constant 0 : index
    %54 = vector.load %arg3[%c7, %c0_18, %c0_19] : memref<9x1x64xf32, #tpu.memory_space<vmem>>, vector<1x1x64xf32>
    %55 = vector.shape_cast %54 : vector<1x1x64xf32> to vector<1x64xf32>
    %56 = vector.shape_cast %55 : vector<1x64xf32> to vector<1x1x64xf32>
    %57 = vector.broadcast %56 : vector<1x1x64xf32> to vector<8x8x64xf32>
    %58 = arith.mulf %53, %57 : vector<8x8x64xf32>
    %59 = arith.addf %52, %58 : vector<8x8x64xf32>
    %60 = vector.extract_strided_slice %2 {offsets = [2, 2, 0], sizes = [8, 8, 64], strides = [1, 1, 1]} : vector<10x10x64xf32> to vector<8x8x64xf32>
    %c8 = arith.constant 8 : index
    %c0_20 = arith.constant 0 : index
    %c0_21 = arith.constant 0 : index
    %61 = vector.load %arg3[%c8, %c0_20, %c0_21] : memref<9x1x64xf32, #tpu.memory_space<vmem>>, vector<1x1x64xf32>
    %62 = vector.shape_cast %61 : vector<1x1x64xf32> to vector<1x64xf32>
    %63 = vector.shape_cast %62 : vector<1x64xf32> to vector<1x1x64xf32>
    %64 = vector.broadcast %63 : vector<1x1x64xf32> to vector<8x8x64xf32>
    %65 = arith.mulf %60, %64 : vector<8x8x64xf32>
    %66 = arith.addf %59, %65 : vector<8x8x64xf32>
    %c0_22 = arith.constant 0 : index
    %c0_23 = arith.constant 0 : index
    %67 = vector.load %arg4[%c0_22, %c0_23] : memref<1x64xf32, #tpu.memory_space<vmem>>, vector<1x64xf32>
    %68 = vector.shape_cast %67 : vector<1x64xf32> to vector<1x1x64xf32>
    %69 = vector.broadcast %68 : vector<1x1x64xf32> to vector<8x8x64xf32>
    %70 = arith.addf %66, %69 : vector<8x8x64xf32>
    %71 = arith.negf %70 : vector<8x8x64xf32>
    %72 = math.exp %71 : vector<8x8x64xf32>
    %cst_24 = arith.constant 1.000000e+00 : f32
    %73 = vector.broadcast %cst_24 : f32 to vector<8x8x64xf32>
    %74 = arith.addf %73, %72 : vector<8x8x64xf32>
    %75 = arith.divf %73, %74 : vector<8x8x64xf32>
    %76 = arith.mulf %70, %75 : vector<8x8x64xf32>
    %77 = vector.shape_cast %76 : vector<8x8x64xf32> to vector<64x64xf32>
    %cst_25 = arith.constant dense<0.000000e+00> : vector<64xf32>
    %78 = vector.multi_reduction <add>, %77, %cst_25 [0] : vector<64x64xf32> to vector<64xf32>
    %79 = vector.shape_cast %78 : vector<64xf32> to vector<1x64xf32>
    %cst_26 = arith.constant 6.400000e+01 : f32
    %80 = vector.broadcast %cst_26 : f32 to vector<1x64xf32>
    %81 = arith.divf %79, %80 : vector<1x64xf32>
    %c0_27 = arith.constant 0 : index
    %c0_28 = arith.constant 0 : index
    %82 = vector.load %arg5[%c0_27, %c0_28] : memref<64x4xf32, #tpu.memory_space<vmem>>, vector<64x4xf32>
    %cst_29 = arith.constant dense<0.000000e+00> : vector<1x4xf32>
    %83 = tpu.matmul %81, %82, %cst_29 {dimension_numbers = #tpu.dot_dimension_numbers<[1], [0], [0], [1], [0, 0, 1, 1], [], []>} : vector<1x64xf32>, vector<64x4xf32>, vector<1x4xf32> -> vector<1x4xf32>
    %c0_30 = arith.constant 0 : index
    %c0_31 = arith.constant 0 : index
    %84 = vector.load %arg6[%c0_30, %c0_31] : memref<1x4xf32, #tpu.memory_space<vmem>>, vector<1x4xf32>
    %85 = arith.addf %83, %84 : vector<1x4xf32>
    %86 = arith.negf %85 : vector<1x4xf32>
    %87 = math.exp %86 : vector<1x4xf32>
    %cst_32 = arith.constant 1.000000e+00 : f32
    %88 = vector.broadcast %cst_32 : f32 to vector<1x4xf32>
    %89 = arith.addf %88, %87 : vector<1x4xf32>
    %90 = arith.divf %88, %89 : vector<1x4xf32>
    %91 = arith.mulf %85, %90 : vector<1x4xf32>
    %c0_33 = arith.constant 0 : index
    %c0_34 = arith.constant 0 : index
    %92 = vector.load %arg7[%c0_33, %c0_34] : memref<4x64xf32, #tpu.memory_space<vmem>>, vector<4x64xf32>
    %cst_35 = arith.constant dense<0.000000e+00> : vector<1x64xf32>
    %93 = tpu.matmul %91, %92, %cst_35 {dimension_numbers = #tpu.dot_dimension_numbers<[1], [0], [0], [1], [0, 0, 1, 1], [], []>} : vector<1x4xf32>, vector<4x64xf32>, vector<1x64xf32> -> vector<1x64xf32>
    %c0_36 = arith.constant 0 : index
    %c0_37 = arith.constant 0 : index
    %94 = vector.load %arg8[%c0_36, %c0_37] : memref<1x64xf32, #tpu.memory_space<vmem>>, vector<1x64xf32>
    %95 = arith.addf %93, %94 : vector<1x64xf32>
    %96 = arith.negf %95 : vector<1x64xf32>
    %97 = math.exp %96 : vector<1x64xf32>
    %cst_38 = arith.constant 1.000000e+00 : f32
    %98 = vector.broadcast %cst_38 : f32 to vector<1x64xf32>
    %99 = arith.addf %98, %97 : vector<1x64xf32>
    %100 = arith.divf %98, %99 : vector<1x64xf32>
    %101 = vector.broadcast %100 : vector<1x64xf32> to vector<64x64xf32>
    %102 = arith.mulf %77, %101 : vector<64x64xf32>
    %103 = arith.truncf %102 : vector<64x64xf32> to vector<64x64xbf16>
    %c0_39 = arith.constant 0 : index
    %c0_40 = arith.constant 0 : index
    %104 = vector.load %arg9[%c0_39, %c0_40] : memref<64x16xbf16, #tpu.memory_space<vmem>>, vector<64x16xbf16>
    %cst_41 = arith.constant dense<0.000000e+00> : vector<64x16xf32>
    %105 = tpu.matmul %103, %104, %cst_41 {dimension_numbers = #tpu.dot_dimension_numbers<[1], [0], [0], [1], [0, 0, 1, 1], [], []>} : vector<64x64xbf16>, vector<64x16xbf16>, vector<64x16xf32> -> vector<64x16xf32>
    %c0_42 = arith.constant 0 : index
    %c0_43 = arith.constant 0 : index
    %106 = vector.load %arg10[%c0_42, %c0_43] : memref<1x16xf32, #tpu.memory_space<vmem>>, vector<1x16xf32>
    %107 = vector.broadcast %106 : vector<1x16xf32> to vector<64x16xf32>
    %108 = arith.addf %105, %107 : vector<64x16xf32>
    %c0_44 = arith.constant 0 : index
    %c0_45 = arith.constant 0 : index
    %c0_46 = arith.constant 0 : index
    %109 = vector.load %arg2[%c0_44, %c0_45, %c0_46] : memref<1x64x16xbf16, #tpu.memory_space<vmem>>, vector<1x64x16xbf16>
    %110 = vector.shape_cast %109 : vector<1x64x16xbf16> to vector<64x16xbf16>
    %111 = arith.extf %110 : vector<64x16xbf16> to vector<64x16xf32>
    %112 = arith.addf %108, %111 : vector<64x16xf32>
    %113 = arith.truncf %112 : vector<64x16xf32> to vector<64x16xbf16>
    %c0_47 = arith.constant 0 : index
    %c0_48 = arith.constant 0 : index
    %114 = vector.load %arg11[%c0_47, %c0_48] : memref<16x64xbf16, #tpu.memory_space<vmem>>, vector<16x64xbf16>
    %cst_49 = arith.constant dense<0.000000e+00> : vector<64x64xf32>
    %115 = tpu.matmul %113, %114, %cst_49 {dimension_numbers = #tpu.dot_dimension_numbers<[1], [0], [0], [1], [0, 0, 1, 1], [], []>} : vector<64x16xbf16>, vector<16x64xbf16>, vector<64x64xf32> -> vector<64x64xf32>
    %c0_50 = arith.constant 0 : index
    %c0_51 = arith.constant 0 : index
    %116 = vector.load %arg12[%c0_50, %c0_51] : memref<1x64xf32, #tpu.memory_space<vmem>>, vector<1x64xf32>
    %117 = vector.broadcast %116 : vector<1x64xf32> to vector<64x64xf32>
    %118 = arith.addf %115, %117 : vector<64x64xf32>
    %119 = arith.negf %118 : vector<64x64xf32>
    %120 = math.exp %119 : vector<64x64xf32>
    %cst_52 = arith.constant 1.000000e+00 : f32
    %121 = vector.broadcast %cst_52 : f32 to vector<64x64xf32>
    %122 = arith.addf %121, %120 : vector<64x64xf32>
    %123 = arith.divf %121, %122 : vector<64x64xf32>
    %124 = arith.mulf %118, %123 : vector<64x64xf32>
    %cst_53 = arith.constant dense<0.000000e+00> : vector<64xf32>
    %125 = vector.multi_reduction <add>, %124, %cst_53 [0] : vector<64x64xf32> to vector<64xf32>
    %126 = vector.shape_cast %125 : vector<64xf32> to vector<1x64xf32>
    %cst_54 = arith.constant 6.400000e+01 : f32
    %127 = vector.broadcast %cst_54 : f32 to vector<1x64xf32>
    %128 = arith.divf %126, %127 : vector<1x64xf32>
    %c0_55 = arith.constant 0 : index
    %c0_56 = arith.constant 0 : index
    %129 = vector.load %arg13[%c0_55, %c0_56] : memref<64x32xf32, #tpu.memory_space<vmem>>, vector<64x32xf32>
    %cst_57 = arith.constant dense<0.000000e+00> : vector<1x32xf32>
    %130 = tpu.matmul %128, %129, %cst_57 {dimension_numbers = #tpu.dot_dimension_numbers<[1], [0], [0], [1], [0, 0, 1, 1], [], []>} : vector<1x64xf32>, vector<64x32xf32>, vector<1x32xf32> -> vector<1x32xf32>
    %c0_58 = arith.constant 0 : index
    %c0_59 = arith.constant 0 : index
    %131 = vector.load %arg14[%c0_58, %c0_59] : memref<1x32xf32, #tpu.memory_space<vmem>>, vector<1x32xf32>
    %132 = arith.addf %130, %131 : vector<1x32xf32>
    %133 = vector.shape_cast %132 : vector<1x32xf32> to vector<1x1x32xf32>
    %c0_60 = arith.constant 0 : index
    %c0_61 = arith.constant 0 : index
    %c0_62 = arith.constant 0 : index
    %134 = vector.load %arg15[%c0_60, %c0_61, %c0_62] : memref<1x1x32xf32, #tpu.memory_space<vmem>>, vector<1x1x32xf32>
    tpu.vector_store %arg15[%c0_60, %c0_61, %c0_62], %133 {strides = array<i32>} : memref<1x1x32xf32, #tpu.memory_space<vmem>>, vector<1x1x32xf32>,
    return
  }
  func.func @transform_0(%arg0: i32) -> (i32, i32, i32, i32) {
    %c0_i32 = arith.constant 0 : i32
    %c0_i32_0 = arith.constant 0 : i32
    %c0_i32_1 = arith.constant 0 : i32
    %c0_i32_2 = arith.constant 0 : i32
    return %arg0, %c0_i32, %c0_i32_0, %c0_i32_1 : i32, i32, i32, i32
  }
  func.func @transform_1(%arg0: i32) -> (i32, i32, i32) {
    %c0_i32 = arith.constant 0 : i32
    %c0_i32_0 = arith.constant 0 : i32
    %c0_i32_1 = arith.constant 0 : i32
    return %arg0, %c0_i32, %c0_i32_0 : i32, i32, i32
  }
  func.func @transform_2(%arg0: i32) -> (i32, i32, i32) {
    %c0_i32 = arith.constant 0 : i32
    %c0_i32_0 = arith.constant 0 : i32
    %c0_i32_1 = arith.constant 0 : i32
    %c0_i32_2 = arith.constant 0 : i32
    return %c0_i32, %c0_i32_0, %c0_i32_1 : i32, i32, i32
  }
  func.func @transform_3(%arg0: i32) -> (i32, i32) {
    %c0_i32 = arith.constant 0 : i32
    %c0_i32_0 = arith.constant 0 : i32
    %c0_i32_1 = arith.constant 0 : i32
    return %c0_i32, %c0_i32_0 : i32, i32
  }
  func.func @transform_4(%arg0: i32) -> (i32, i32) {
    %c0_i32 = arith.constant 0 : i32
    %c0_i32_0 = arith.constant 0 : i32
    %c0_i32_1 = arith.constant 0 : i32
    return %c0_i32, %c0_i32_0 : i32, i32
  }
  func.func @transform_5(%arg0: i32) -> (i32, i32) {
    %c0_i32 = arith.constant 0 : i32
    %c0_i32_0 = arith.constant 0 : i32
    %c0_i32_1 = arith.constant 0 : i32
    return %c0_i32, %c0_i32_0 : i32, i32
  }
  func.func @transform_6(%arg0: i32) -> (i32, i32) {
    %c0_i32 = arith.constant 0 : i32
    %c0_i32_0 = arith.constant 0 : i32
    %c0_i32_1 = arith.constant 0 : i32
    return %c0_i32, %c0_i32_0 : i32, i32
  }
  func.func @transform_7(%arg0: i32) -> (i32, i32) {
    %c0_i32 = arith.constant 0 : i32
    %c0_i32_0 = arith.constant 0 : i32
    %c0_i32_1 = arith.constant 0 : i32
    return %c0_i32, %c0_i32_0 : i32, i32
  }
  func.func @transform_8(%arg0: i32) -> (i32, i32) {
    %c0_i32 = arith.constant 0 : i32
    %c0_i32_0 = arith.constant 0 : i32
    %c0_i32_1 = arith.constant 0 : i32
    return %c0_i32, %c0_i32_0 : i32, i32
  }
  func.func @transform_9(%arg0: i32) -> (i32, i32) {
    %c0_i32 = arith.constant 0 : i32
    %c0_i32_0 = arith.constant 0 : i32
    %c0_i32_1 = arith.constant 0 : i32
    return %c0_i32, %c0_i32_0 : i32, i32
  }
  func.func @transform_10(%arg0: i32) -> (i32, i32) {
    %c0_i32 = arith.constant 0 : i32
    %c0_i32_0 = arith.constant 0 : i32
    %c0_i32_1 = arith.constant 0 : i32
    return %c0_i32, %c0_i32_0 : i32, i32
  }
  func.func @transform_11(%arg0: i32) -> (i32, i32) {
    %c0_i32 = arith.constant 0 : i32
    %c0_i32_0 = arith.constant 0 : i32
    %c0_i32_1 = arith.constant 0 : i32
    return %c0_i32, %c0_i32_0 : i32, i32
  }
  func.func @transform_12(%arg0: i32) -> (i32, i32) {
    %c0_i32 = arith.constant 0 : i32
    %c0_i32_0 = arith.constant 0 : i32
    %c0_i32_1 = arith.constant 0 : i32
    return %c0_i32, %c0_i32_0 : i32, i32
  }
  func.func @transform_13(%arg0: i32) -> (i32, i32) {
    %c0_i32 = arith.constant 0 : i32
    %c0_i32_0 = arith.constant 0 : i32
    %c0_i32_1 = arith.constant 0 : i32
    return %c0_i32, %c0_i32_0 : i32, i32
  }
  func.func @transform_14(%arg0: i32) -> (i32, i32, i32) {
    %c0_i32 = arith.constant 0 : i32
    %c0_i32_0 = arith.constant 0 : i32
    %c0_i32_1 = arith.constant 0 : i32
    return %arg0, %c0_i32, %c0_i32_0 : i32, i32, i32
  }
}

</mosaic_0001>

<llo_original>
// kernel: efficientnet_backbone_forward.2
$region0: #{efficientnet_backbone_forward.2}
  #allocation0 [shape = 'u32[]', space=smem, size = 0x4, offset = 0x4, fixed_abs, tag = 'smem constant byte address 0x4 - core index']
  #allocation1 [shape = 'u32[144,128]{1,0:T(1,128)}', space=vmem, size = 0x12000, scoped, tag = 'internal scratch']
  %s0 = inlined_call_operand.vmem [shape: bf16[128,32], index: 0, kind: input, shape index: {}]
  %s1 = inlined_call_operand.vmem [shape: bf16[32,16], index: 1, kind: input, shape index: {}]
  %s2 = inlined_call_operand.vmem [shape: f32[1,16], index: 2, kind: input, shape index: {}]
  %s3 = inlined_call_operand.vmem [shape: bf16[16,64], index: 3, kind: input, shape index: {}]
  %s4 = inlined_call_operand.vmem [shape: f32[1,64], index: 4, kind: input, shape index: {}]
  %s5 = inlined_call_operand.vmem [shape: bf16[128,16], index: 5, kind: output, shape index: {0}]
  %s6 = inlined_call_operand.vmem [shape: bf16[128,64], index: 6, kind: output, shape index: {1}]
  %7 = xla_tuple %s5, %s6
  %s8 = sld [smem:[#allocation0]]
  $region38: #{efficientnet_backbone_forward.2} parent=0
    _
  %s10 = ssub.s32 1, %s8
  %s11 = scalar_select 0, %s10, %s8
  // Predicated region
  $region2: #{efficientnet_backbone_forward.2} parent=0 // pred_check
    _
  $region3: #{efficientnet_backbone_forward.2} parent=0 // pred_check_branch
    %13 = sbr.rel (0) target = $region5
  $region4: #{efficientnet_backbone_forward.2} parent=0 // pred_region
    _
  $region5: #{efficientnet_backbone_forward.2} parent=0 // pred_fallthru
    _
  // Predicated region
  $region6: #{efficientnet_backbone_forward.2} parent=0 // pred_check
    _
  $region7: #{efficientnet_backbone_forward.2} parent=0 // pred_check_branch
    %15 = sbr.rel (0) target = $region9
  $region8: #{efficientnet_backbone_forward.2} parent=0 // pred_region
    _
  $region9: #{efficientnet_backbone_forward.2} parent=0 // pred_fallthru
    _
  // Predicated region
  $region10: #{efficientnet_backbone_forward.2} parent=0 // pred_check
    _
  $region11: #{efficientnet_backbone_forward.2} parent=0 // pred_check_branch
    %17 = sbr.rel (0) target = $region13
  $region12: #{efficientnet_backbone_forward.2} parent=0 // pred_region
    _
  $region13: #{efficientnet_backbone_forward.2} parent=0 // pred_fallthru
    _
  // Predicated region
  $region14: #{efficientnet_backbone_forward.2} parent=0 // pred_check
    _
  $region15: #{efficientnet_backbone_forward.2} parent=0 // pred_check_branch
    %19 = sbr.rel (0) target = $region17
  $region16: #{efficientnet_backbone_forward.2} parent=0 // pred_region
    _
  $region17: #{efficientnet_backbone_forward.2} parent=0 // pred_fallthru
    _
  // Predicated region
  $region18: #{efficientnet_backbone_forward.2} parent=0 // pred_check
    _
  $region19: #{efficientnet_backbone_forward.2} parent=0 // pred_check_branch
    %21 = sbr.rel (0) target = $region21
  $region20: #{efficientnet_backbone_forward.2} parent=0 // pred_region
    _
  $region21: #{efficientnet_backbone_forward.2} parent=0 // pred_fallthru
    _
  %v23 = vld [vmem:[%s0] sm:$0xf]
  %v24 = vld [vmem:[%s0 + $0x4] sm:$0xf]
  %v25 = vld [vmem:[%s0 + $0x8] sm:$0xf]
  %v26 = vld [vmem:[%s0 + $0xc] sm:$0xf]
  %v27 = vld [vmem:[%s0 + $0x10] sm:$0xf]
  %v28 = vld [vmem:[%s0 + $0x14] sm:$0xf]
  %v29 = vld [vmem:[%s0 + $0x18] sm:$0xf]
  %v30 = vld [vmem:[%s0 + $0x1c] sm:$0xf]
  %v31 = vld [vmem:[%s0 + $0x20] sm:$0xf]
  %v32 = vld [vmem:[%s0 + $0x24] sm:$0xf]
  %v33 = vld [vmem:[%s0 + $0x28] sm:$0xf]
  %v34 = vld [vmem:[%s0 + $0x2c] sm:$0xf]
  %v35 = vld [vmem:[%s0 + $0x30] sm:$0xf]
  %v36 = vld [vmem:[%s0 + $0x34] sm:$0xf]
  %v37 = vld [vmem:[%s0 + $0x38] sm:$0xf]
  %v38 = vld [vmem:[%s0 + $0x3c] sm:$0xf]
  %v39 = vld [vmem:[%s1] sm:$0xf]
  %v40 = vld [vmem:[%s1 + $0x4] sm:$0xf]
  %v41 = vld [vmem:[%s1 + $0x8] sm:$0xf]
  %v42 = vld [vmem:[%s1 + $0xc] sm:$0xf]
  %v43 = vld [vmem:[%s2] sm:$0x1]
  %v45 = vlaneseq
  %v46 = vshrl.u32 %v45, 7
  %v47 = vsub.s32 0, %v46
  %v48 = vrot.slane %v43, %v47
  %v66 = vunpack.c.l.b16 %v23
  %v67 = vunpack.c.l.b16 %v24
  %v68 = vunpack.c.l.b16 %v25
  %v69 = vunpack.c.l.b16 %v26
  %v70 = vunpack.c.l.b16 %v27
  %v71 = vunpack.c.l.b16 %v28
  %v72 = vunpack.c.l.b16 %v29
  %v73 = vunpack.c.l.b16 %v30
  %v74 = vunpack.c.l.b16 %v31
  %v75 = vunpack.c.l.b16 %v32
  %v76 = vunpack.c.l.b16 %v33
  %v77 = vunpack.c.l.b16 %v34
  %v78 = vunpack.c.l.b16 %v35
  %v79 = vunpack.c.l.b16 %v36
  %v80 = vunpack.c.l.b16 %v37
  %v81 = vunpack.c.l.b16 %v38
  %v82 = vpack.c.b16 %v67, %v66
  %v83 = vpack.c.b16 %v69, %v68
  %v84 = vpack.c.b16 %v71, %v70
  %v85 = vpack.c.b16 %v73, %v72
  %v86 = vpack.c.b16 %v75, %v74
  %v87 = vpack.c.b16 %v77, %v76
  %v88 = vpack.c.b16 %v79, %v78
  %v89 = vpack.c.b16 %v81, %v80
  %v94 = vunpack.c.l.b16 %v39
  %v95 = vunpack.c.l.b16 %v40
  %v96 = vunpack.c.l.b16 %v41
  %v97 = vunpack.c.l.b16 %v42
  %v98 = vpack.c.b16 %v95, %v94
  %v99 = vpack.c.b16 %v97, %v96
  %vm102 = vcmask 261120
  %v104 = vsel %vm102, %v82, 0
  %v107 = vsel %vm102, %v83, 0
  %v110 = vsel %vm102, %v84, 0
  %v113 = vsel %vm102, %v85, 0
  %v116 = vsel %vm102, %v86, 0
  %v119 = vsel %vm102, %v87, 0
  %v122 = vsel %vm102, %v88, 0
  %v125 = vsel %vm102, %v89, 0
  %127 = vmatprep.subr.bf16.mxu0 0
  %128 = vmatpush1.bf16.msra.mxu0 0
  %129 = vmatprep.subr.bf16.mxu0 0
  %130 = vmatpush1.bf16.msra.mxu0 0
  %131 = vmatprep.subr.bf16.mxu0 0
  %132 = vmatpush1.bf16.msra.mxu0 0
  %133 = vmatprep.subr.bf16.mxu0 0
  %134 = vmatpush1.bf16.msra.mxu0 0
  %135 = vmatprep.subr.bf16.mxu0 0
  %136 = vmatpush1.bf16.msra.mxu0 0
  %137 = vmatprep.subr.bf16.mxu0 0
  %138 = vmatpush1.bf16.msra.mxu0 0
  %139 = vmatprep.subr.bf16.mxu0 0
  %140 = vmatpush1.bf16.msra.mxu0 %v99
  %141 = vmatprep.subr.bf16.mxu0 0
  %142 = vmatpush1.bf16.msra.mxu0 %v98
  %143 = vmatprep.subr.bf16.mxu0 0
  %144 = vmatpush2.bf16.msra.mxu0 0
  %145 = vmatprep.subr.bf16.mxu0 0
  %146 = vmatpush2.bf16.msra.mxu0 0
  %147 = vmatprep.subr.bf16.mxu0 0
  %148 = vmatpush2.bf16.msra.mxu0 0
  %149 = vmatprep.subr.bf16.mxu0 0
  %150 = vmatpush2.bf16.msra.mxu0 0
  %151 = vmatprep.subr.bf16.mxu0 0
  %152 = vmatpush2.bf16.msra.mxu0 0
  %153 = vmatprep.subr.bf16.mxu0 0
  %154 = vmatpush2.bf16.msra.mxu0 0
  %155 = vmatprep.subr.bf16.mxu0 0
  %156 = vmatpush2.bf16.msra.mxu0 0
  %157 = vmatprep.subr.bf16.mxu0 0
  %158 = vmatpush2.bf16.msra.mxu0 0
  %159 = vmatprep.mubr.bf16.mxu0 0
  %160 = vmatmul.mubr.bf16.gmra.mxu0 %v104
  %v161 = vpop.f32.mrf.mxu0
  %v162 = vadd.f32 %v48, %v161
  %v163 = vpop.f32.mrf.mxu0
  %v164 = vpop.f32.mrf.mxu0
  %v165 = vadd.f32 %v48, %v164
  %v166 = vpop.f32.mrf.mxu0
  %167 = vmatprep.mubr.bf16.mxu0 0
  %168 = vmatmul.mubr.bf16.gmra.mxu0 %v107
  %v169 = vpop.f32.mrf.mxu0
  %v170 = vadd.f32 %v48, %v169
  %v171 = vpop.f32.mrf.mxu0
  %v172 = vpop.f32.mrf.mxu0
  %v173 = vadd.f32 %v48, %v172
  %v174 = vpop.f32.mrf.mxu0
  %175 = vmatprep.mubr.bf16.mxu0 0
  %176 = vmatmul.mubr.bf16.gmra.mxu0 %v110
  %v177 = vpop.f32.mrf.mxu0
  %v178 = vadd.f32 %v48, %v177
  %v179 = vpop.f32.mrf.mxu0
  %v180 = vpop.f32.mrf.mxu0
  %v181 = vadd.f32 %v48, %v180
  %v182 = vpop.f32.mrf.mxu0
  %183 = vmatprep.mubr.bf16.mxu0 0
  %184 = vmatmul.mubr.bf16.gmra.mxu0 %v113
  %v185 = vpop.f32.mrf.mxu0
  %v186 = vadd.f32 %v48, %v185
  %v187 = vpop.f32.mrf.mxu0
  %v188 = vpop.f32.mrf.mxu0
  %v189 = vadd.f32 %v48, %v188
  %v190 = vpop.f32.mrf.mxu0
  %191 = vmatprep.mubr.bf16.mxu0 0
  %192 = vmatmul.mubr.bf16.gmra.mxu0 %v116
  %v193 = vpop.f32.mrf.mxu0
  %v194 = vadd.f32 %v48, %v193
  %v195 = vpop.f32.mrf.mxu0
  %v196 = vpop.f32.mrf.mxu0
  %v197 = vadd.f32 %v48, %v196
  %v198 = vpop.f32.mrf.mxu0
  %199 = vmatprep.mubr.bf16.mxu0 0
  %200 = vmatmul.mubr.bf16.gmra.mxu0 %v119
  %v201 = vpop.f32.mrf.mxu0
  %v202 = vadd.f32 %v48, %v201
  %v203 = vpop.f32.mrf.mxu0
  %v204 = vpop.f32.mrf.mxu0
  %v205 = vadd.f32 %v48, %v204
  %v206 = vpop.f32.mrf.mxu0
  %207 = vmatprep.mubr.bf16.mxu0 0
  %208 = vmatmul.mubr.bf16.gmra.mxu0 %v122
  %v209 = vpop.f32.mrf.mxu0
  %v210 = vadd.f32 %v48, %v209
  %v211 = vpop.f32.mrf.mxu0
  %v212 = vpop.f32.mrf.mxu0
  %v213 = vadd.f32 %v48, %v212
  %v214 = vpop.f32.mrf.mxu0
  %215 = vmatprep.mubr.bf16.mxu0 0
  %216 = vmatmul.mubr.bf16.gmra.mxu0 %v125
  %v217 = vpop.f32.mrf.mxu0
  %v218 = vadd.f32 %v48, %v217
  %v219 = vpop.f32.mrf.mxu0
  %v220 = vpop.f32.mrf.mxu0
  %v221 = vadd.f32 %v48, %v220
  %v222 = vpop.f32.mrf.mxu0
  %223 = vdwg.mxu0
  %v224 = vxor.u32 %v162, 2147483648
  %v225 = vxor.u32 %v165, 2147483648
  %v226 = vxor.u32 %v170, 2147483648
  %v227 = vxor.u32 %v173, 2147483648
  %v228 = vxor.u32 %v178, 2147483648
  %v229 = vxor.u32 %v181, 2147483648
  %v230 = vxor.u32 %v186, 2147483648
  %v231 = vxor.u32 %v189, 2147483648
  %v232 = vxor.u32 %v194, 2147483648
  %v233 = vxor.u32 %v197, 2147483648
  %v234 = vxor.u32 %v202, 2147483648
  %v235 = vxor.u32 %v205, 2147483648
  %v236 = vxor.u32 %v210, 2147483648
  %v237 = vxor.u32 %v213, 2147483648
  %v238 = vxor.u32 %v218, 2147483648
  %v239 = vxor.u32 %v221, 2147483648
  %v240 = vmul.f32 %v224, 1.442695
  %v241 = vpow.pop %v240
  %v242 = vmul.f32 %v225, 1.442695
  %v243 = vpow.pop %v242
  %v244 = vmul.f32 %v226, 1.442695
  %v245 = vpow.pop %v244
  %v246 = vmul.f32 %v227, 1.442695
  %v247 = vpow.pop %v246
  %v248 = vmul.f32 %v228, 1.442695
  %v249 = vpow.pop %v248
  %v250 = vmul.f32 %v229, 1.442695
  %v251 = vpow.pop %v250
  %v252 = vmul.f32 %v230, 1.442695
  %v253 = vpow.pop %v252
  %v254 = vmul.f32 %v231, 1.442695
  %v255 = vpow.pop %v254
  %v256 = vmul.f32 %v232, 1.442695
  %v257 = vpow.pop %v256
  %v258 = vmul.f32 %v233, 1.442695
  %v259 = vpow.pop %v258
  %v260 = vmul.f32 %v234, 1.442695
  %v261 = vpow.pop %v260
  %v262 = vmul.f32 %v235, 1.442695
  %v263 = vpow.pop %v262
  %v264 = vmul.f32 %v236, 1.442695
  %v265 = vpow.pop %v264
  %v266 = vmul.f32 %v237, 1.442695
  %v267 = vpow.pop %v266
  %v268 = vmul.f32 %v238, 1.442695
  %v269 = vpow.pop %v268
  %v270 = vmul.f32 %v239, 1.442695
  %v271 = vpow.pop %v270
  %v272 = vadd.f32 %v241, 1.0
  %v273 = vadd.f32 %v243, 1.0
  %v274 = vadd.f32 %v245, 1.0
  %v275 = vadd.f32 %v247, 1.0
  %v276 = vadd.f32 %v249, 1.0
  %v277 = vadd.f32 %v251, 1.0
  %v278 = vadd.f32 %v253, 1.0
  %v279 = vadd.f32 %v255, 1.0
  %v280 = vadd.f32 %v257, 1.0
  %v281 = vadd.f32 %v259, 1.0
  %v282 = vadd.f32 %v261, 1.0
  %v283 = vadd.f32 %v263, 1.0
  %v284 = vadd.f32 %v265, 1.0
  %v285 = vadd.f32 %v267, 1.0
  %v286 = vadd.f32 %v269, 1.0
  %v287 = vadd.f32 %v271, 1.0
  %v288 = vrcp.pop %v272
  %v289 = vmul.f32 1.0, %v288
  %v290 = vrcp.pop %v273
  %v291 = vmul.f32 1.0, %v290
  %v292 = vrcp.pop %v274
  %v293 = vmul.f32 1.0, %v292
  %v294 = vrcp.pop %v275
  %v295 = vmul.f32 1.0, %v294
  %v296 = vrcp.pop %v276
  %v297 = vmul.f32 1.0, %v296
  %v298 = vrcp.pop %v277
  %v299 = vmul.f32 1.0, %v298
  %v300 = vrcp.pop %v278
  %v301 = vmul.f32 1.0, %v300
  %v302 = vrcp.pop %v279
  %v303 = vmul.f32 1.0, %v302
  %v304 = vrcp.pop %v280
  %v305 = vmul.f32 1.0, %v304
  %v306 = vrcp.pop %v281
  %v307 = vmul.f32 1.0, %v306
  %v308 = vrcp.pop %v282
  %v309 = vmul.f32 1.0, %v308
  %v310 = vrcp.pop %v283
  %v311 = vmul.f32 1.0, %v310
  %v312 = vrcp.pop %v284
  %v313 = vmul.f32 1.0, %v312
  %v314 = vrcp.pop %v285
  %v315 = vmul.f32 1.0, %v314
  %v316 = vrcp.pop %v286
  %v317 = vmul.f32 1.0, %v316
  %v318 = vrcp.pop %v287
  %v319 = vmul.f32 1.0, %v318
  %v320 = vmul.f32 %v162, %v289
  %v321 = vmul.f32 %v165, %v291
  %v322 = vmul.f32 %v170, %v293
  %v323 = vmul.f32 %v173, %v295
  %v324 = vmul.f32 %v178, %v297
  %v325 = vmul.f32 %v181, %v299
  %v326 = vmul.f32 %v186, %v301
  %v327 = vmul.f32 %v189, %v303
  %v328 = vmul.f32 %v194, %v305
  %v329 = vmul.f32 %v197, %v307
  %v330 = vmul.f32 %v202, %v309
  %v331 = vmul.f32 %v205, %v311
  %v332 = vmul.f32 %v210, %v313
  %v333 = vmul.f32 %v213, %v315
  %v334 = vmul.f32 %v218, %v317
  %v335 = vmul.f32 %v221, %v319
  %v336 = vpack.c.bf16 %v321, %v320
  %v337 = vpack.c.bf16 %v323, %v322
  %v338 = vpack.c.bf16 %v325, %v324
  %v339 = vpack.c.bf16 %v327, %v326
  %v340 = vpack.c.bf16 %v329, %v328
  %v341 = vpack.c.bf16 %v331, %v330
  %v342 = vpack.c.bf16 %v333, %v332
  %v343 = vpack.c.bf16 %v335, %v334
  %v352 = vunpack.c.l.b16 %v336
  %v353 = vunpack.c.h.b16 %v336
  %v354 = vunpack.c.l.b16 %v337
  %v355 = vunpack.c.h.b16 %v337
  %v356 = vunpack.c.l.b16 %v338
  %v357 = vunpack.c.h.b16 %v338
  %v358 = vunpack.c.l.b16 %v339
  %v359 = vunpack.c.h.b16 %v339
  %v360 = vunpack.c.l.b16 %v340
  %v361 = vunpack.c.h.b16 %v340
  %v362 = vunpack.c.l.b16 %v341
  %v363 = vunpack.c.h.b16 %v341
  %v364 = vunpack.c.l.b16 %v342
  %v365 = vunpack.c.h.b16 %v342
  %v366 = vunpack.c.l.b16 %v343
  %v367 = vunpack.c.h.b16 %v343
  %v368 = vpack.c.b16 %v352, %v352
  %v369 = vpack.c.b16 %v353, %v353
  %v370 = vpack.c.b16 %v354, %v354
  %v371 = vpack.c.b16 %v355, %v355
  %v372 = vpack.c.b16 %v356, %v356
  %v373 = vpack.c.b16 %v357, %v357
  %v374 = vpack.c.b16 %v358, %v358
  %v375 = vpack.c.b16 %v359, %v359
  %v376 = vpack.c.b16 %v360, %v360
  %v377 = vpack.c.b16 %v361, %v361
  %v378 = vpack.c.b16 %v362, %v362
  %v379 = vpack.c.b16 %v363, %v363
  %v380 = vpack.c.b16 %v364, %v364
  %v381 = vpack.c.b16 %v365, %v365
  %v382 = vpack.c.b16 %v366, %v366
  %v383 = vpack.c.b16 %v367, %v367
  %vm400 = vcmask 125952
  %401 = vst.msk [vmem:[%s5] sm:$0xf] %vm400, %v368
  %402 = vst.msk [vmem:[%s5 + $0x4] sm:$0xf] %vm400, %v369
  %403 = vst.msk [vmem:[%s5 + $0x8] sm:$0xf] %vm400, %v370
  %404 = vst.msk [vmem:[%s5 + $0xc] sm:$0xf] %vm400, %v371
  %405 = vst.msk [vmem:[%s5 + $0x10] sm:$0xf] %vm400, %v372
  %406 = vst.msk [vmem:[%s5 + $0x14] sm:$0xf] %vm400, %v373
  %407 = vst.msk [vmem:[%s5 + $0x18] sm:$0xf] %vm400, %v374
  %408 = vst.msk [vmem:[%s5 + $0x1c] sm:$0xf] %vm400, %v375
  %409 = vst.msk [vmem:[%s5 + $0x20] sm:$0xf] %vm400, %v376
  %410 = vst.msk [vmem:[%s5 + $0x24] sm:$0xf] %vm400, %v377
  %411 = vst.msk [vmem:[%s5 + $0x28] sm:$0xf] %vm400, %v378
  %412 = vst.msk [vmem:[%s5 + $0x2c] sm:$0xf] %vm400, %v379
  %413 = vst.msk [vmem:[%s5 + $0x30] sm:$0xf] %vm400, %v380
  %414 = vst.msk [vmem:[%s5 + $0x34] sm:$0xf] %vm400, %v381
  %415 = vst.msk [vmem:[%s5 + $0x38] sm:$0xf] %vm400, %v382
  %416 = vst.msk [vmem:[%s5 + $0x3c] sm:$0xf] %vm400, %v383
  %v417 = vld [vmem:[%s3] sm:$0xf]
  %v418 = vld [vmem:[%s3 + $0x4] sm:$0xf]
  %v419 = vld [vmem:[%s4] sm:$0x1]
  %v421 = vlaneseq
  %v422 = vshrl.u32 %v421, 7
  %v423 = vsub.s32 0, %v422
  %v424 = vrot.slane %v419, %v423
  %v428 = vunpack.c.l.b16 %v417
  %v429 = vunpack.c.l.b16 %v418
  %v430 = vpack.c.b16 %v429, %v428
  %vm432 = vcmask 130048
  %v434 = vsel %vm432, %v336, 0
  %v437 = vsel %vm432, %v337, 0
  %v440 = vsel %vm432, %v338, 0
  %v443 = vsel %vm432, %v339, 0
  %v446 = vsel %vm432, %v340, 0
  %v449 = vsel %vm432, %v341, 0
  %v452 = vsel %vm432, %v342, 0
  %v455 = vsel %vm432, %v343, 0
  %457 = vmatprep.subr.bf16.mxu0 0
  %458 = vmatpush1.bf16.msra.mxu0 0
  %459 = vmatprep.subr.bf16.mxu0 0
  %460 = vmatpush1.bf16.msra.mxu0 0
  %461 = vmatprep.subr.bf16.mxu0 0
  %462 = vmatpush1.bf16.msra.mxu0 0
  %463 = vmatprep.subr.bf16.mxu0 0
  %464 = vmatpush1.bf16.msra.mxu0 0
  %465 = vmatprep.subr.bf16.mxu0 0
  %466 = vmatpush1.bf16.msra.mxu0 0
  %467 = vmatprep.subr.bf16.mxu0 0
  %468 = vmatpush1.bf16.msra.mxu0 0
  %469 = vmatprep.subr.bf16.mxu0 0
  %470 = vmatpush1.bf16.msra.mxu0 0
  %471 = vmatprep.subr.bf16.mxu0 0
  %472 = vmatpush1.bf16.msra.mxu0 %v430
  %473 = vmatprep.subr.bf16.mxu0 0
  %474 = vmatpush2.bf16.msra.mxu0 0
  %475 = vmatprep.subr.bf16.mxu0 0
  %476 = vmatpush2.bf16.msra.mxu0 0
  %477 = vmatprep.subr.bf16.mxu0 0
  %478 = vmatpush2.bf16.msra.mxu0 0
  %479 = vmatprep.subr.bf16.mxu0 0
  %480 = vmatpush2.bf16.msra.mxu0 0
  %481 = vmatprep.subr.bf16.mxu0 0
  %482 = vmatpush2.bf16.msra.mxu0 0
  %483 = vmatprep.subr.bf16.mxu0 0
  %484 = vmatpush2.bf16.msra.mxu0 0
  %485 = vmatprep.subr.bf16.mxu0 0
  %486 = vmatpush2.bf16.msra.mxu0 0
  %487 = vmatprep.subr.bf16.mxu0 0
  %488 = vmatpush2.bf16.msra.mxu0 0
  %489 = vmatprep.mubr.bf16.mxu0 0
  %490 = vmatmul.mubr.bf16.gmra.mxu0 %v434
  %v491 = vpop.f32.mrf.mxu0
  %v492 = vadd.f32 %v424, %v491
  %v493 = vpop.f32.mrf.mxu0
  %v494 = vpop.f32.mrf.mxu0
  %v495 = vadd.f32 %v424, %v494
  %v496 = vpop.f32.mrf.mxu0
  %497 = vmatprep.mubr.bf16.mxu0 0
  %498 = vmatmul.mubr.bf16.gmra.mxu0 %v437
  %v499 = vpop.f32.mrf.mxu0
  %v500 = vadd.f32 %v424, %v499
  %v501 = vpop.f32.mrf.mxu0
  %v502 = vpop.f32.mrf.mxu0
  %v503 = vadd.f32 %v424, %v502
  %v504 = vpop.f32.mrf.mxu0
  %505 = vmatprep.mubr.bf16.mxu0 0
  %506 = vmatmul.mubr.bf16.gmra.mxu0 %v440
  %v507 = vpop.f32.mrf.mxu0
  %v508 = vadd.f32 %v424, %v507
  %v509 = vpop.f32.mrf.mxu0
  %v510 = vpop.f32.mrf.mxu0
  %v511 = vadd.f32 %v424, %v510
  %v512 = vpop.f32.mrf.mxu0
  %513 = vmatprep.mubr.bf16.mxu0 0
  %514 = vmatmul.mubr.bf16.gmra.mxu0 %v443
  %v515 = vpop.f32.mrf.mxu0
  %v516 = vadd.f32 %v424, %v515
  %v517 = vpop.f32.mrf.mxu0
  %v518 = vpop.f32.mrf.mxu0
  %v519 = vadd.f32 %v424, %v518
  %v520 = vpop.f32.mrf.mxu0
  %521 = vmatprep.mubr.bf16.mxu0 0
  %522 = vmatmul.mubr.bf16.gmra.mxu0 %v446
  %v523 = vpop.f32.mrf.mxu0
  %v524 = vadd.f32 %v424, %v523
  %v525 = vpop.f32.mrf.mxu0
  %v526 = vpop.f32.mrf.mxu0
  %v527 = vadd.f32 %v424, %v526
  %v528 = vpop.f32.mrf.mxu0
  %529 = vmatprep.mubr.bf16.mxu0 0
  %530 = vmatmul.mubr.bf16.gmra.mxu0 %v449
  %v531 = vpop.f32.mrf.mxu0
  %v532 = vadd.f32 %v424, %v531
  %v533 = vpop.f32.mrf.mxu0
  %v534 = vpop.f32.mrf.mxu0
  %v535 = vadd.f32 %v424, %v534
  %v536 = vpop.f32.mrf.mxu0
  %537 = vmatprep.mubr.bf16.mxu0 0
  %538 = vmatmul.mubr.bf16.gmra.mxu0 %v452
  %v539 = vpop.f32.mrf.mxu0
  %v540 = vadd.f32 %v424, %v539
  %v541 = vpop.f32.mrf.mxu0
  %v542 = vpop.f32.mrf.mxu0
  %v543 = vadd.f32 %v424, %v542
  %v544 = vpop.f32.mrf.mxu0
  %545 = vmatprep.mubr.bf16.mxu0 0
  %546 = vmatmul.mubr.bf16.gmra.mxu0 %v455
  %v547 = vpop.f32.mrf.mxu0
  %v548 = vadd.f32 %v424, %v547
  %v549 = vpop.f32.mrf.mxu0
  %v550 = vpop.f32.mrf.mxu0
  %v551 = vadd.f32 %v424, %v550
  %v552 = vpop.f32.mrf.mxu0
  %553 = vdwg.mxu0
  %v554 = vxor.u32 %v492, 2147483648
  %v555 = vxor.u32 %v495, 2147483648
  %v556 = vxor.u32 %v500, 2147483648
  %v557 = vxor.u32 %v503, 2147483648
  %v558 = vxor.u32 %v508, 2147483648
  %v559 = vxor.u32 %v511, 2147483648
  %v560 = vxor.u32 %v516, 2147483648
  %v561 = vxor.u32 %v519, 2147483648
  %v562 = vxor.u32 %v524, 2147483648
  %v563 = vxor.u32 %v527, 2147483648
  %v564 = vxor.u32 %v532, 2147483648
  %v565 = vxor.u32 %v535, 2147483648
  %v566 = vxor.u32 %v540, 2147483648
  %v567 = vxor.u32 %v543, 2147483648
  %v568 = vxor.u32 %v548, 2147483648
  %v569 = vxor.u32 %v551, 2147483648
  %v570 = vmul.f32 %v554, 1.442695
  %v571 = vpow.pop %v570
  %v572 = vmul.f32 %v555, 1.442695
  %v573 = vpow.pop %v572
  %v574 = vmul.f32 %v556, 1.442695
  %v575 = vpow.pop %v574
  %v576 = vmul.f32 %v557, 1.442695
  %v577 = vpow.pop %v576
  %v578 = vmul.f32 %v558, 1.442695
  %v579 = vpow.pop %v578
  %v580 = vmul.f32 %v559, 1.442695
  %v581 = vpow.pop %v580
  %v582 = vmul.f32 %v560, 1.442695
  %v583 = vpow.pop %v582
  %v584 = vmul.f32 %v561, 1.442695
  %v585 = vpow.pop %v584
  %v586 = vmul.f32 %v562, 1.442695
  %v587 = vpow.pop %v586
  %v588 = vmul.f32 %v563, 1.442695
  %v589 = vpow.pop %v588
  %v590 = vmul.f32 %v564, 1.442695
  %v591 = vpow.pop %v590
  %v592 = vmul.f32 %v565, 1.442695
  %v593 = vpow.pop %v592
  %v594 = vmul.f32 %v566, 1.442695
  %v595 = vpow.pop %v594
  %v596 = vmul.f32 %v567, 1.442695
  %v597 = vpow.pop %v596
  %v598 = vmul.f32 %v568, 1.442695
  %v599 = vpow.pop %v598
  %v600 = vmul.f32 %v569, 1.442695
  %v601 = vpow.pop %v600
  %v602 = vadd.f32 %v571, 1.0
  %v603 = vadd.f32 %v573, 1.0
  %v604 = vadd.f32 %v575, 1.0
  %v605 = vadd.f32 %v577, 1.0
  %v606 = vadd.f32 %v579, 1.0
  %v607 = vadd.f32 %v581, 1.0
  %v608 = vadd.f32 %v583, 1.0
  %v609 = vadd.f32 %v585, 1.0
  %v610 = vadd.f32 %v587, 1.0
  %v611 = vadd.f32 %v589, 1.0
  %v612 = vadd.f32 %v591, 1.0
  %v613 = vadd.f32 %v593, 1.0
  %v614 = vadd.f32 %v595, 1.0
  %v615 = vadd.f32 %v597, 1.0
  %v616 = vadd.f32 %v599, 1.0
  %v617 = vadd.f32 %v601, 1.0
  %v618 = vrcp.pop %v602
  %v619 = vmul.f32 1.0, %v618
  %v620 = vrcp.pop %v603
  %v621 = vmul.f32 1.0, %v620
  %v622 = vrcp.pop %v604
  %v623 = vmul.f32 1.0, %v622
  %v624 = vrcp.pop %v605
  %v625 = vmul.f32 1.0, %v624
  %v626 = vrcp.pop %v606
  %v627 = vmul.f32 1.0, %v626
  %v628 = vrcp.pop %v607
  %v629 = vmul.f32 1.0, %v628
  %v630 = vrcp.pop %v608
  %v631 = vmul.f32 1.0, %v630
  %v632 = vrcp.pop %v609
  %v633 = vmul.f32 1.0, %v632
  %v634 = vrcp.pop %v610
  %v635 = vmul.f32 1.0, %v634
  %v636 = vrcp.pop %v611
  %v637 = vmul.f32 1.0, %v636
  %v638 = vrcp.pop %v612
  %v639 = vmul.f32 1.0, %v638
  %v640 = vrcp.pop %v613
  %v641 = vmul.f32 1.0, %v640
  %v642 = vrcp.pop %v614
  %v643 = vmul.f32 1.0, %v642
  %v644 = vrcp.pop %v615
  %v645 = vmul.f32 1.0, %v644
  %v646 = vrcp.pop %v616
  %v647 = vmul.f32 1.0, %v646
  %v648 = vrcp.pop %v617
  %v649 = vmul.f32 1.0, %v648
  %v650 = vmul.f32 %v492, %v619
  %v651 = vmul.f32 %v495, %v621
  %v652 = vmul.f32 %v500, %v623
  %v653 = vmul.f32 %v503, %v625
  %v654 = vmul.f32 %v508, %v627
  %v655 = vmul.f32 %v511, %v629
  %v656 = vmul.f32 %v516, %v631
  %v657 = vmul.f32 %v519, %v633
  %v658 = vmul.f32 %v524, %v635
  %v659 = vmul.f32 %v527, %v637
  %v660 = vmul.f32 %v532, %v639
  %v661 = vmul.f32 %v535, %v641
  %v662 = vmul.f32 %v540, %v643
  %v663 = vmul.f32 %v543, %v645
  %v664 = vmul.f32 %v548, %v647
  %v665 = vmul.f32 %v551, %v649
  %v666 = vpack.c.bf16 %v651, %v650
  %v667 = vpack.c.bf16 %v653, %v652
  %v668 = vpack.c.bf16 %v655, %v654
  %v669 = vpack.c.bf16 %v657, %v656
  %v670 = vpack.c.bf16 %v659, %v658
  %v671 = vpack.c.bf16 %v661, %v660
  %v672 = vpack.c.bf16 %v663, %v662
  %v673 = vpack.c.bf16 %v665, %v664
  %v682 = vunpack.c.l.b16 %v666
  %v683 = vunpack.c.h.b16 %v666
  %v684 = vunpack.c.l.b16 %v667
  %v685 = vunpack.c.h.b16 %v667
  %v686 = vunpack.c.l.b16 %v668
  %v687 = vunpack.c.h.b16 %v668
  %v688 = vunpack.c.l.b16 %v669
  %v689 = vunpack.c.h.b16 %v669
  %v690 = vunpack.c.l.b16 %v670
  %v691 = vunpack.c.h.b16 %v670
  %v692 = vunpack.c.l.b16 %v671
  %v693 = vunpack.c.h.b16 %v671
  %v694 = vunpack.c.l.b16 %v672
  %v695 = vunpack.c.h.b16 %v672
  %v696 = vunpack.c.l.b16 %v673
  %v697 = vunpack.c.h.b16 %v673
  %v698 = vpack.c.b16 %v682, %v682
  %v699 = vpack.c.b16 %v683, %v683
  %v700 = vpack.c.b16 %v684, %v684
  %v701 = vpack.c.b16 %v685, %v685
  %v702 = vpack.c.b16 %v686, %v686
  %v703 = vpack.c.b16 %v687, %v687
  %v704 = vpack.c.b16 %v688, %v688
  %v705 = vpack.c.b16 %v689, %v689
  %v706 = vpack.c.b16 %v690, %v690
  %v707 = vpack.c.b16 %v691, %v691
  %v708 = vpack.c.b16 %v692, %v692
  %v709 = vpack.c.b16 %v693, %v693
  %v710 = vpack.c.b16 %v694, %v694
  %v711 = vpack.c.b16 %v695, %v695
  %v712 = vpack.c.b16 %v696, %v696
  %v713 = vpack.c.b16 %v697, %v697
  %vm730 = vcmask 519168
  %731 = vst.msk [vmem:[%s6] sm:$0xf] %vm730, %v698
  %732 = vst.msk [vmem:[%s6 + $0x4] sm:$0xf] %vm730, %v699
  %733 = vst.msk [vmem:[%s6 + $0x8] sm:$0xf] %vm730, %v700
  %734 = vst.msk [vmem:[%s6 + $0xc] sm:$0xf] %vm730, %v701
  %735 = vst.msk [vmem:[%s6 + $0x10] sm:$0xf] %vm730, %v702
  %736 = vst.msk [vmem:[%s6 + $0x14] sm:$0xf] %vm730, %v703
  %737 = vst.msk [vmem:[%s6 + $0x18] sm:$0xf] %vm730, %v704
  %738 = vst.msk [vmem:[%s6 + $0x1c] sm:$0xf] %vm730, %v705
  %739 = vst.msk [vmem:[%s6 + $0x20] sm:$0xf] %vm730, %v706
  %740 = vst.msk [vmem:[%s6 + $0x24] sm:$0xf] %vm730, %v707
  %741 = vst.msk [vmem:[%s6 + $0x28] sm:$0xf] %vm730, %v708
  %742 = vst.msk [vmem:[%s6 + $0x2c] sm:$0xf] %vm730, %v709
  %743 = vst.msk [vmem:[%s6 + $0x30] sm:$0xf] %vm730, %v710
  %744 = vst.msk [vmem:[%s6 + $0x34] sm:$0xf] %vm730, %v711
  %745 = vst.msk [vmem:[%s6 + $0x38] sm:$0xf] %vm730, %v712
  %746 = vst.msk [vmem:[%s6 + $0x3c] sm:$0xf] %vm730, %v713
  // Predicated region
  $region22: #{efficientnet_backbone_forward.2} parent=0 // pred_check
    _
  $region23: #{efficientnet_backbone_forward.2} parent=0 // pred_check_branch
    %748 = sbr.rel (0) target = $region25
  $region24: #{efficientnet_backbone_forward.2} parent=0 // pred_region
    _
  $region25: #{efficientnet_backbone_forward.2} parent=0 // pred_fallthru
    _
  // Predicated region
  $region26: #{efficientnet_backbone_forward.2} parent=0 // pred_check
    _
  $region27: #{efficientnet_backbone_forward.2} parent=0 // pred_check_branch
    %750 = sbr.rel (0) target = $region29
  $region28: #{efficientnet_backbone_forward.2} parent=0 // pred_region
    _
  $region29: #{efficientnet_backbone_forward.2} parent=0 // pred_fallthru
    _
  // Predicated region
  $region30: #{efficientnet_backbone_forward.2} parent=0 // pred_check
    _
  $region31: #{efficientnet_backbone_forward.2} parent=0 // pred_check_branch
    %752 = sbr.rel (0) target = $region33
  $region32: #{efficientnet_backbone_forward.2} parent=0 // pred_region
    _
  $region33: #{efficientnet_backbone_forward.2} parent=0 // pred_fallthru
    _
  // Predicated region
  $region34: #{efficientnet_backbone_forward.2} parent=0 // pred_check
    _
  $region35: #{efficientnet_backbone_forward.2} parent=0 // pred_check_branch
    %754 = sbr.rel (0) target = $region37
  $region36: #{efficientnet_backbone_forward.2} parent=0 // pred_region
    _
  $region37: #{efficientnet_backbone_forward.2} parent=0 // pred_fallthru
    _

// kernel: efficientnet_backbone_forward.3
$region0: #{efficientnet_backbone_forward.3}
  #allocation0 [shape = 'u32[]', space=smem, size = 0x4, offset = 0x4, fixed_abs, tag = 'smem constant byte address 0x4 - core index']
  #allocation1 [shape = 'u32[144,128]{1,0:T(1,128)}', space=vmem, size = 0x12000, scoped, tag = 'internal scratch']
  %s0 = inlined_call_operand.vmem [shape: bf16[2,10,10,64], index: 0, kind: input, shape index: {}]
  %s1 = inlined_call_operand.vmem [shape: bf16[2,64,16], index: 1, kind: input, shape index: {}]
  %s2 = inlined_call_operand.vmem [shape: f32[9,1,64], index: 2, kind: input, shape index: {}]
  %s3 = inlined_call_operand.vmem [shape: f32[1,64], index: 3, kind: input, shape index: {}]
  %s4 = inlined_call_operand.vmem [shape: f32[64,4], index: 4, kind: input, shape index: {}]
  %s5 = inlined_call_operand.vmem [shape: f32[1,4], index: 5, kind: input, shape index: {}]
  %s6 = inlined_call_operand.vmem [shape: f32[4,64], index: 6, kind: input, shape index: {}]
  %s7 = inlined_call_operand.vmem [shape: f32[1,64], index: 7, kind: input, shape index: {}]
  %s8 = inlined_call_operand.vmem [shape: bf16[64,16], index: 8, kind: input, shape index: {}]
  %s9 = inlined_call_operand.vmem [shape: f32[1,16], index: 9, kind: input, shape index: {}]
  %s10 = inlined_call_operand.vmem [shape: bf16[16,64], index: 10, kind: input, shape index: {}]
  %s11 = inlined_call_operand.vmem [shape: f32[1,64], index: 11, kind: input, shape index: {}]
  %s12 = inlined_call_operand.vmem [shape: f32[64,32], index: 12, kind: input, shape index: {}]
  %s13 = inlined_call_operand.vmem [shape: f32[1,32], index: 13, kind: input, shape index: {}]
  %s14 = inlined_call_operand.hbm [shape: f32[2,1,32], index: 14, kind: output, shape index: {}]
  %s15 = sld [smem:[#allocation0]]
  $region89: #{efficientnet_backbone_forward.3} parent=0
    _
  %s17 = ssub.s32 1, %s15
  %s18 = scalar_select 0, %s17, %s15
  $region1: #{efficientnet_backbone_forward.3} parent=0
    #allocation2 [shape = 'u8[1024]{0}', space=vmem, size = 0x400, scoped, tag = 'output window, operand 0']
    #allocation3 [shape = 's32[2]{0}', space=sflag, size = 0x8, scoped, tag = 'scoped memory for efficientnet_backbone_forward.3']
    %19 = vsyncpa [#allocation3], 0
    %s20 = scalar_lea.sflag [#allocation3], 1
    %21 = vsyncpa %s20, 0
    loop: start=0, step=1, limit=4
    $region2: #{efficientnet_backbone_forward.3} parent=1 // loop_pre_header
      _
    $region3: #{efficientnet_backbone_forward.3} parent=1 // loop_header
      %s23 = sphi 0, %s27
      %p24 = scmp.ge.s32.totalorder %s23, 4
      %s33 = sphi 0, %s35
      %s36 = sphi 0, %s33
      %s37 = sphi 0, %s36
      %s53 = sphi 0, %s37
      %s59 = sphi 0, %s61
      %s62 = sphi 0, %s59
      %s63 = sphi 0, %s62
      %s79 = sphi 0, %s63
      %s83 = sphi 0, %s83
      %s85 = sphi 0, %s83
      %s86 = sphi 0, %s85
      %s100 = sphi 0, %s86
      %s104 = sphi 0, %s104
      %s106 = sphi 0, %s104
      %s107 = sphi 0, %s106
      %s121 = sphi 0, %s107
      %s125 = sphi 0, %s125
      %s127 = sphi 0, %s125
      %s128 = sphi 0, %s127
      %s142 = sphi 0, %s128
      %s146 = sphi 0, %s146
      %s148 = sphi 0, %s146
      %s149 = sphi 0, %s148
      %s163 = sphi 0, %s149
      %s167 = sphi 0, %s167
      %s169 = sphi 0, %s167
      %s170 = sphi 0, %s169
      %s184 = sphi 0, %s170
      %s188 = sphi 0, %s188
      %s190 = sphi 0, %s188
      %s191 = sphi 0, %s190
      %s205 = sphi 0, %s191
      %s209 = sphi 0, %s209
      %s211 = sphi 0, %s209
      %s212 = sphi 0, %s211
      %s226 = sphi 0, %s212
      %s230 = sphi 0, %s230
      %s232 = sphi 0, %s230
      %s233 = sphi 0, %s232
      %s247 = sphi 0, %s233
      %s251 = sphi 0, %s251
      %s253 = sphi 0, %s251
      %s254 = sphi 0, %s253
      %s268 = sphi 0, %s254
      %s272 = sphi 0, %s272
      %s274 = sphi 0, %s272
      %s275 = sphi 0, %s274
      %s289 = sphi 0, %s275
      %s293 = sphi 0, %s293
      %s295 = sphi 0, %s293
      %s296 = sphi 0, %s295
      %s310 = sphi 0, %s296
      %s314 = sphi 0, %s314
      %s316 = sphi 0, %s314
      %s317 = sphi 0, %s316
      %s331 = sphi 0, %s317
      %s337 = sphi 0, %s339
      %s340 = sphi 0, %s337
      %s341 = sphi 0, %s340
      %s357 = sphi 0, %s341
    $region4: #{efficientnet_backbone_forward.3} parent=1 // loop_header_branch
      %26 = sbr.rel (%p24) target = $region8
    $region5: #{efficientnet_backbone_forward.3} parent=1 // loop_body
      %s28 = ssub.s32 %s23, 1
      %s29 = ssub.s32 %s23, 2
      %s30 = sadd.s32 %s23, 1
      %s31 = ssub.s32 %s23, %s30
      %p32 = scmp.eq.s32.totalorder %s31, 0
      %s34 = sadd.s32 %s33, 1
      %s35 = scalar_select %p32, %s33, %s34
      %p38 = pneg %p32
      %p39 = scmp.eq.s32.totalorder %s23, 1
      %p40 = por %p38, %p39
      %p41 = scmp.ne.s32.totalorder %s33, %s36
      %p42 = scmp.eq.s32.totalorder %s23, 0
      %p43 = por %p41, %p42
      %p44 = scmp.ne.s32.totalorder %s33, %s36
      %p45 = scmp.eq.s32.totalorder %s28, 1
      %p46 = por %p44, %p45
      %p47 = scmp.ne.s32.totalorder %s36, %s37
      %p48 = scmp.eq.s32.totalorder %s28, 0
      %p49 = por %p47, %p48
      %p50 = scmp.ne.s32.totalorder %s36, %s37
      %p51 = scmp.eq.s32.totalorder %s29, 1
      %p52 = por %p50, %p51
      %p54 = scmp.ne.s32.totalorder %s37, %s53
      %p55 = scmp.eq.s32.totalorder %s29, 0
      %p56 = por %p54, %p55
      %s57 = ssub.s32 %s23, %s30
      %p58 = scmp.eq.s32.totalorder %s57, 0
      %s60 = sadd.s32 %s59, 1
      %s61 = scalar_select %p58, %s59, %s60
      %p64 = pneg %p58
      %p65 = scmp.eq.s32.totalorder %s23, 1
      %p66 = por %p64, %p65
      %p67 = scmp.ne.s32.totalorder %s59, %s62
      %p68 = scmp.eq.s32.totalorder %s23, 0
      %p69 = por %p67, %p68
      %p70 = scmp.ne.s32.totalorder %s59, %s62
      %p71 = scmp.eq.s32.totalorder %s28, 1
      %p72 = por %p70, %p71
      %p73 = scmp.ne.s32.totalorder %s62, %s63
      %p74 = scmp.eq.s32.totalorder %s28, 0
      %p75 = por %p73, %p74
      %p76 = scmp.ne.s32.totalorder %s62, %s63
      %p77 = scmp.eq.s32.totalorder %s29, 1
      %p78 = por %p76, %p77
      %p80 = scmp.ne.s32.totalorder %s63, %s79
      %p81 = scmp.eq.s32.totalorder %s29, 0
      %p82 = por %p80, %p81
      %s84 = sadd.s32 %s83, 1
      %p87 = scmp.eq.s32.totalorder %s23, 1
      %p88 = scmp.ne.s32.totalorder %s83, %s85
      %p89 = scmp.eq.s32.totalorder %s23, 0
      %p90 = por %p88, %p89
      %p91 = scmp.ne.s32.totalorder %s83, %s85
      %p92 = scmp.eq.s32.totalorder %s28, 1
      %p93 = por %p91, %p92
      %p94 = scmp.ne.s32.totalorder %s85, %s86
      %p95 = scmp.eq.s32.totalorder %s28, 0
      %p96 = por %p94, %p95
      %p97 = scmp.ne.s32.totalorder %s85, %s86
      %p98 = scmp.eq.s32.totalorder %s29, 1
      %p99 = por %p97, %p98
      %p101 = scmp.ne.s32.totalorder %s86, %s100
      %p102 = scmp.eq.s32.totalorder %s29, 0
      %p103 = por %p101, %p102
      %s105 = sadd.s32 %s104, 1
      %p108 = scmp.eq.s32.totalorder %s23, 1
      %p109 = scmp.ne.s32.totalorder %s104, %s106
      %p110 = scmp.eq.s32.totalorder %s23, 0
      %p111 = por %p109, %p110
      %p112 = scmp.ne.s32.totalorder %s104, %s106
      %p113 = scmp.eq.s32.totalorder %s28, 1
      %p114 = por %p112, %p113
      %p115 = scmp.ne.s32.totalorder %s106, %s107
      %p116 = scmp.eq.s32.totalorder %s28, 0
      %p117 = por %p115, %p116
      %p118 = scmp.ne.s32.totalorder %s106, %s107
      %p119 = scmp.eq.s32.totalorder %s29, 1
      %p120 = por %p118, %p119
      %p122 = scmp.ne.s32.totalorder %s107, %s121
      %p123 = scmp.eq.s32.totalorder %s29, 0
      %p124 = por %p122, %p123
      %s126 = sadd.s32 %s125, 1
      %p129 = scmp.eq.s32.totalorder %s23, 1
      %p130 = scmp.ne.s32.totalorder %s125, %s127
      %p131 = scmp.eq.s32.totalorder %s23, 0
      %p132 = por %p130, %p131
      %p133 = scmp.ne.s32.totalorder %s125, %s127
      %p134 = scmp.eq.s32.totalorder %s28, 1
      %p135 = por %p133, %p134
      %p136 = scmp.ne.s32.totalorder %s127, %s128
      %p137 = scmp.eq.s32.totalorder %s28, 0
      %p138 = por %p136, %p137
      %p139 = scmp.ne.s32.totalorder %s127, %s128
      %p140 = scmp.eq.s32.totalorder %s29, 1
      %p141 = por %p139, %p140
      %p143 = scmp.ne.s32.totalorder %s128, %s142
      %p144 = scmp.eq.s32.totalorder %s29, 0
      %p145 = por %p143, %p144
      %s147 = sadd.s32 %s146, 1
      %p150 = scmp.eq.s32.totalorder %s23, 1
      %p151 = scmp.ne.s32.totalorder %s146, %s148
      %p152 = scmp.eq.s32.totalorder %s23, 0
      %p153 = por %p151, %p152
      %p154 = scmp.ne.s32.totalorder %s146, %s148
      %p155 = scmp.eq.s32.totalorder %s28, 1
      %p156 = por %p154, %p155
      %p157 = scmp.ne.s32.totalorder %s148, %s149
      %p158 = scmp.eq.s32.totalorder %s28, 0
      %p159 = por %p157, %p158
      %p160 = scmp.ne.s32.totalorder %s148, %s149
      %p161 = scmp.eq.s32.totalorder %s29, 1
      %p162 = por %p160, %p161
      %p164 = scmp.ne.s32.totalorder %s149, %s163
      %p165 = scmp.eq.s32.totalorder %s29, 0
      %p166 = por %p164, %p165
      %s168 = sadd.s32 %s167, 1
      %p171 = scmp.eq.s32.totalorder %s23, 1
      %p172 = scmp.ne.s32.totalorder %s167, %s169
      %p173 = scmp.eq.s32.totalorder %s23, 0
      %p174 = por %p172, %p173
      %p175 = scmp.ne.s32.totalorder %s167, %s169
      %p176 = scmp.eq.s32.totalorder %s28, 1
      %p177 = por %p175, %p176
      %p178 = scmp.ne.s32.totalorder %s169, %s170
      %p179 = scmp.eq.s32.totalorder %s28, 0
      %p180 = por %p178, %p179
      %p181 = scmp.ne.s32.totalorder %s169, %s170
      %p182 = scmp.eq.s32.totalorder %s29, 1
      %p183 = por %p181, %p182
      %p185 = scmp.ne.s32.totalorder %s170, %s184
      %p186 = scmp.eq.s32.totalorder %s29, 0
      %p187 = por %p185, %p186
      %s189 = sadd.s32 %s188, 1
      %p192 = scmp.eq.s32.totalorder %s23, 1
      %p193 = scmp.ne.s32.totalorder %s188, %s190
      %p194 = scmp.eq.s32.totalorder %s23, 0
      %p195 = por %p193, %p194
      %p196 = scmp.ne.s32.totalorder %s188, %s190
      %p197 = scmp.eq.s32.totalorder %s28, 1
      %p198 = por %p196, %p197
      %p199 = scmp.ne.s32.totalorder %s190, %s191
      %p200 = scmp.eq.s32.totalorder %s28, 0
      %p201 = por %p199, %p200
      %p202 = scmp.ne.s32.totalorder %s190, %s191
      %p203 = scmp.eq.s32.totalorder %s29, 1
      %p204 = por %p202, %p203
      %p206 = scmp.ne.s32.totalorder %s191, %s205
      %p207 = scmp.eq.s32.totalorder %s29, 0
      %p208 = por %p206, %p207
      %s210 = sadd.s32 %s209, 1
      %p213 = scmp.eq.s32.totalorder %s23, 1
      %p214 = scmp.ne.s32.totalorder %s209, %s211
      %p215 = scmp.eq.s32.totalorder %s23, 0
      %p216 = por %p214, %p215
      %p217 = scmp.ne.s32.totalorder %s209, %s211
      %p218 = scmp.eq.s32.totalorder %s28, 1
      %p219 = por %p217, %p218
      %p220 = scmp.ne.s32.totalorder %s211, %s212
      %p221 = scmp.eq.s32.totalorder %s28, 0
      %p222 = por %p220, %p221
      %p223 = scmp.ne.s32.totalorder %s211, %s212
      %p224 = scmp.eq.s32.totalorder %s29, 1
      %p225 = por %p223, %p224
      %p227 = scmp.ne.s32.totalorder %s212, %s226
      %p228 = scmp.eq.s32.totalorder %s29, 0
      %p229 = por %p227, %p228
      %s231 = sadd.s32 %s230, 1
      %p234 = scmp.eq.s32.totalorder %s23, 1
      %p235 = scmp.ne.s32.totalorder %s230, %s232
      %p236 = scmp.eq.s32.totalorder %s23, 0
      %p237 = por %p235, %p236
      %p238 = scmp.ne.s32.totalorder %s230, %s232
      %p239 = scmp.eq.s32.totalorder %s28, 1
      %p240 = por %p238, %p239
      %p241 = scmp.ne.s32.totalorder %s232, %s233
      %p242 = scmp.eq.s32.totalorder %s28, 0
      %p243 = por %p241, %p242
      %p244 = scmp.ne.s32.totalorder %s232, %s233
      %p245 = scmp.eq.s32.totalorder %s29, 1
      %p246 = por %p244, %p245
      %p248 = scmp.ne.s32.totalorder %s233, %s247
      %p249 = scmp.eq.s32.totalorder %s29, 0
      %p250 = por %p248, %p249
      %s252 = sadd.s32 %s251, 1
      %p255 = scmp.eq.s32.totalorder %s23, 1
      %p256 = scmp.ne.s32.totalorder %s251, %s253
      %p257 = scmp.eq.s32.totalorder %s23, 0
      %p258 = por %p256, %p257
      %p259 = scmp.ne.s32.totalorder %s251, %s253
      %p260 = scmp.eq.s32.totalorder %s28, 1
      %p261 = por %p259, %p260
      %p262 = scmp.ne.s32.totalorder %s253, %s254
      %p263 = scmp.eq.s32.totalorder %s28, 0
      %p264 = por %p262, %p263
      %p265 = scmp.ne.s32.totalorder %s253, %s254
      %p266 = scmp.eq.s32.totalorder %s29, 1
      %p267 = por %p265, %p266
      %p269 = scmp.ne.s32.totalorder %s254, %s268
      %p270 = scmp.eq.s32.totalorder %s29, 0
      %p271 = por %p269, %p270
      %s273 = sadd.s32 %s272, 1
      %p276 = scmp.eq.s32.totalorder %s23, 1
      %p277 = scmp.ne.s32.totalorder %s272, %s274
      %p278 = scmp.eq.s32.totalorder %s23, 0
      %p279 = por %p277, %p278
      %p280 = scmp.ne.s32.totalorder %s272, %s274
      %p281 = scmp.eq.s32.totalorder %s28, 1
      %p282 = por %p280, %p281
      %p283 = scmp.ne.s32.totalorder %s274, %s275
      %p284 = scmp.eq.s32.totalorder %s28, 0
      %p285 = por %p283, %p284
      %p286 = scmp.ne.s32.totalorder %s274, %s275
      %p287 = scmp.eq.s32.totalorder %s29, 1
      %p288 = por %p286, %p287
      %p290 = scmp.ne.s32.totalorder %s275, %s289
      %p291 = scmp.eq.s32.totalorder %s29, 0
      %p292 = por %p290, %p291
      %s294 = sadd.s32 %s293, 1
      %p297 = scmp.eq.s32.totalorder %s23, 1
      %p298 = scmp.ne.s32.totalorder %s293, %s295
      %p299 = scmp.eq.s32.totalorder %s23, 0
      %p300 = por %p298, %p299
      %p301 = scmp.ne.s32.totalorder %s293, %s295
      %p302 = scmp.eq.s32.totalorder %s28, 1
      %p303 = por %p301, %p302
      %p304 = scmp.ne.s32.totalorder %s295, %s296
      %p305 = scmp.eq.s32.totalorder %s28, 0
      %p306 = por %p304, %p305
      %p307 = scmp.ne.s32.totalorder %s295, %s296
      %p308 = scmp.eq.s32.totalorder %s29, 1
      %p309 = por %p307, %p308
      %p311 = scmp.ne.s32.totalorder %s296, %s310
      %p312 = scmp.eq.s32.totalorder %s29, 0
      %p313 = por %p311, %p312
      %s315 = sadd.s32 %s314, 1
      %p318 = scmp.eq.s32.totalorder %s23, 1
      %p319 = scmp.ne.s32.totalorder %s314, %s316
      %p320 = scmp.eq.s32.totalorder %s23, 0
      %p321 = por %p319, %p320
      %p322 = scmp.ne.s32.totalorder %s314, %s316
      %p323 = scmp.eq.s32.totalorder %s28, 1
      %p324 = por %p322, %p323
      %p325 = scmp.ne.s32.totalorder %s316, %s317
      %p326 = scmp.eq.s32.totalorder %s28, 0
      %p327 = por %p325, %p326
      %p328 = scmp.ne.s32.totalorder %s316, %s317
      %p329 = scmp.eq.s32.totalorder %s29, 1
      %p330 = por %p328, %p329
      %p332 = scmp.ne.s32.totalorder %s317, %s331
      %p333 = scmp.eq.s32.totalorder %s29, 0
      %p334 = por %p332, %p333
      %s335 = ssub.s32 %s23, %s30
      %p336 = scmp.eq.s32.totalorder %s335, 0
      %s338 = sadd.s32 %s337, 1
      %s339 = scalar_select %p336, %s337, %s338
      %p342 = pneg %p336
      %p343 = scmp.eq.s32.totalorder %s23, 1
      %p344 = por %p342, %p343
      %p345 = scmp.ne.s32.totalorder %s337, %s340
      %p346 = scmp.eq.s32.totalorder %s23, 0
      %p347 = por %p345, %p346
      %p348 = scmp.ne.s32.totalorder %s337, %s340
      %p349 = scmp.eq.s32.totalorder %s28, 1
      %p350 = por %p348, %p349
      %p351 = scmp.ne.s32.totalorder %s340, %s341
      %p352 = scmp.eq.s32.totalorder %s28, 0
      %p353 = por %p351, %p352
      %p354 = scmp.ne.s32.totalorder %s340, %s341
      %p355 = scmp.eq.s32.totalorder %s29, 1
      %p356 = por %p354, %p355
      %p358 = scmp.ne.s32.totalorder %s341, %s357
      %p359 = scmp.eq.s32.totalorder %s29, 0
      %p360 = por %p358, %p359
      %p361 = scmp.le.s32.totalorder 1, %s23
      %p362 = scmp.lt.s32.totalorder %s23, 3
      %p363 = pnand %p361, %p362
      %p364 = pneg %p363
      // Predicated region
      $region9: #{efficientnet_backbone_forward.3} parent=5 // pred_check
        _
      $region10: #{efficientnet_backbone_forward.3} parent=5 // pred_check_branch
        %366 = sbr.rel (%p363) target = $region12
      $region11: #{efficientnet_backbone_forward.3} parent=5 // pred_region
        %s367 = ssub.s32 %s23, 1
        // Predicated region
        $region13: #{efficientnet_backbone_forward.3} parent=11 // pred_check
          %p368 = pneg %p96
        $region14: #{efficientnet_backbone_forward.3} parent=11 // pred_check_branch
          %370 = sbr.rel (%p368) target = $region16
        $region15: #{efficientnet_backbone_forward.3} parent=11 // pred_region
          _
        $region16: #{efficientnet_backbone_forward.3} parent=11 // pred_fallthru
          _
        // Predicated region
        $region17: #{efficientnet_backbone_forward.3} parent=11 // pred_check
          %p371 = pneg %p117
        $region18: #{efficientnet_backbone_forward.3} parent=11 // pred_check_branch
          %373 = sbr.rel (%p371) target = $region20
        $region19: #{efficientnet_backbone_forward.3} parent=11 // pred_region
          _
        $region20: #{efficientnet_backbone_forward.3} parent=11 // pred_fallthru
          _
        // Predicated region
        $region21: #{efficientnet_backbone_forward.3} parent=11 // pred_check
          %p374 = pneg %p138
        $region22: #{efficientnet_backbone_forward.3} parent=11 // pred_check_branch
          %376 = sbr.rel (%p374) target = $region24
        $region23: #{efficientnet_backbone_forward.3} parent=11 // pred_region
          _
        $region24: #{efficientnet_backbone_forward.3} parent=11 // pred_fallthru
          _
        // Predicated region
        $region25: #{efficientnet_backbone_forward.3} parent=11 // pred_check
          %p377 = pneg %p159
        $region26: #{efficientnet_backbone_forward.3} parent=11 // pred_check_branch
          %379 = sbr.rel (%p377) target = $region28
        $region27: #{efficientnet_backbone_forward.3} parent=11 // pred_region
          _
        $region28: #{efficientnet_backbone_forward.3} parent=11 // pred_fallthru
          _
        // Predicated region
        $region29: #{efficientnet_backbone_forward.3} parent=11 // pred_check
          %p380 = pneg %p180
        $region30: #{efficientnet_backbone_forward.3} parent=11 // pred_check_branch
          %382 = sbr.rel (%p380) target = $region32
        $region31: #{efficientnet_backbone_forward.3} parent=11 // pred_region
          _
        $region32: #{efficientnet_backbone_forward.3} parent=11 // pred_fallthru
          _
        // Predicated region
        $region33: #{efficientnet_backbone_forward.3} parent=11 // pred_check
          %p383 = pneg %p201
        $region34: #{efficientnet_backbone_forward.3} parent=11 // pred_check_branch
          %385 = sbr.rel (%p383) target = $region36
        $region35: #{efficientnet_backbone_forward.3} parent=11 // pred_region
          _
        $region36: #{efficientnet_backbone_forward.3} parent=11 // pred_fallthru
          _
        // Predicated region
        $region37: #{efficientnet_backbone_forward.3} parent=11 // pred_check
          %p386 = pneg %p222
        $region38: #{efficientnet_backbone_forward.3} parent=11 // pred_check_branch
          %388 = sbr.rel (%p386) target = $region40
        $region39: #{efficientnet_backbone_forward.3} parent=11 // pred_region
          _
        $region40: #{efficientnet_backbone_forward.3} parent=11 // pred_fallthru
          _
        // Predicated region
        $region41: #{efficientnet_backbone_forward.3} parent=11 // pred_check
          %p389 = pneg %p243
        $region42: #{efficientnet_backbone_forward.3} parent=11 // pred_check_branch
          %391 = sbr.rel (%p389) target = $region44
        $region43: #{efficientnet_backbone_forward.3} parent=11 // pred_region
          _
        $region44: #{efficientnet_backbone_forward.3} parent=11 // pred_fallthru
          _
        // Predicated region
        $region45: #{efficientnet_backbone_forward.3} parent=11 // pred_check
          %p392 = pneg %p264
        $region46: #{efficientnet_backbone_forward.3} parent=11 // pred_check_branch
          %394 = sbr.rel (%p392) target = $region48
        $region47: #{efficientnet_backbone_forward.3} parent=11 // pred_region
          _
        $region48: #{efficientnet_backbone_forward.3} parent=11 // pred_fallthru
          _
        // Predicated region
        $region49: #{efficientnet_backbone_forward.3} parent=11 // pred_check
          %p395 = pneg %p285
        $region50: #{efficientnet_backbone_forward.3} parent=11 // pred_check_branch
          %397 = sbr.rel (%p395) target = $region52
        $region51: #{efficientnet_backbone_forward.3} parent=11 // pred_region
          _
        $region52: #{efficientnet_backbone_forward.3} parent=11 // pred_fallthru
          _
        // Predicated region
        $region53: #{efficientnet_backbone_forward.3} parent=11 // pred_check
          %p398 = pneg %p306
        $region54: #{efficientnet_backbone_forward.3} parent=11 // pred_check_branch
          %400 = sbr.rel (%p398) target = $region56
        $region55: #{efficientnet_backbone_forward.3} parent=11 // pred_region
          _
        $region56: #{efficientnet_backbone_forward.3} parent=11 // pred_fallthru
          _
        // Predicated region
        $region57: #{efficientnet_backbone_forward.3} parent=11 // pred_check
          %p401 = pneg %p327
        $region58: #{efficientnet_backbone_forward.3} parent=11 // pred_check_branch
          %403 = sbr.rel (%p401) target = $region60
        $region59: #{efficientnet_backbone_forward.3} parent=11 // pred_region
          _
        $region60: #{efficientnet_backbone_forward.3} parent=11 // pred_fallthru
          _
      $region12: #{efficientnet_backbone_forward.3} parent=5 // pred_fallthru
        _
      %p404 = scmp.lt.s32.totalorder %s23, 2
      // Predicated region
      $region61: #{efficientnet_backbone_forward.3} parent=5 // pred_check
        %p405 = pneg %p404
      $region62: #{efficientnet_backbone_forward.3} parent=5 // pred_check_branch
        %407 = sbr.rel (%p405) target = $region64
      $region63: #{efficientnet_backbone_forward.3} parent=5 // pred_region
        // Predicated region
        $region65: #{efficientnet_backbone_forward.3} parent=63 // pred_check
          %p408 = pneg %p43
        $region66: #{efficientnet_backbone_forward.3} parent=63 // pred_check_branch
          %410 = sbr.rel (%p408) target = $region68
        $region67: #{efficientnet_backbone_forward.3} parent=63 // pred_region
          %p411 = scmp.lt.s32.totalorder %s23, 1
          %s412 = scalar_select %p411, %s23, 1
          %s413 = smul.addr %s412, 20
          %s414 = smul.addr %s413, 4
          %s415 = scalar_lea.vmem %s0, %s414
        $region68: #{efficientnet_backbone_forward.3} parent=63 // pred_fallthru
          _
        // Predicated region
        $region69: #{efficientnet_backbone_forward.3} parent=63 // pred_check
          %p416 = pneg %p69
        $region70: #{efficientnet_backbone_forward.3} parent=63 // pred_check_branch
          %418 = sbr.rel (%p416) target = $region72
        $region71: #{efficientnet_backbone_forward.3} parent=63 // pred_region
          %p419 = scmp.lt.s32.totalorder %s23, 1
          %s420 = scalar_select %p419, %s23, 1
          %s421 = smul.addr %s420, 8
          %s422 = smul.addr %s421, 4
          %s423 = scalar_lea.vmem %s1, %s422
        $region72: #{efficientnet_backbone_forward.3} parent=63 // pred_fallthru
          _
      $region64: #{efficientnet_backbone_forward.3} parent=5 // pred_fallthru
        _
      %p424 = scmp.le.s32.totalorder 1, %s23
      %p425 = scmp.lt.s32.totalorder %s23, 3
      %p426 = pnand %p424, %p425
      %p427 = pneg %p426
      // Predicated region
      $region73: #{efficientnet_backbone_forward.3} parent=5 // pred_check
        _
      $region74: #{efficientnet_backbone_forward.3} parent=5 // pred_check_branch
        %429 = sbr.rel (%p426) target = $region76
      $region75: #{efficientnet_backbone_forward.3} parent=5 // pred_region
        %s430 = ssub.s32 %s23, 1
        %p431 = scmp.lt.s32.totalorder %s28, 1
        %s432 = scalar_select %p431, %s28, 1
        %s433 = smul.addr %s432, 20
        %s434 = smul.addr %s433, 4
        %s435 = scalar_lea.vmem %s0, %s434
        %p436 = pneg %p49
        %p437 = pneg %p46
        %p438 = scmp.lt.s32.totalorder %s28, 1
        %s439 = scalar_select %p438, %s28, 1
        %s440 = smul.addr %s439, 8
        %s441 = smul.addr %s440, 4
        %s442 = scalar_lea.vmem %s1, %s441
        %p443 = pneg %p75
        %p444 = pneg %p72
        %p445 = pneg %p96
        %p446 = pneg %p93
        %p447 = pneg %p117
        %p448 = pneg %p114
        %p449 = pneg %p138
        %p450 = pneg %p135
        %p451 = pneg %p159
        %p452 = pneg %p156
        %p453 = pneg %p180
        %p454 = pneg %p177
        %p455 = pneg %p201
        %p456 = pneg %p198
        %p457 = pneg %p222
        %p458 = pneg %p219
        %p459 = pneg %p243
        %p460 = pneg %p240
        %p461 = pneg %p264
        %p462 = pneg %p261
        %p463 = pneg %p285
        %p464 = pneg %p282
        %p465 = pneg %p306
        %p466 = pneg %p303
        %p467 = pneg %p327
        %p468 = pneg %p324
        %p469 = pneg %p353
        %p470 = pneg %p350
        %s471 = sand.u32 %s340, 1
        %s472 = scalar_lea.sflag [#allocation3], %s471
        %s473 = sand.u32 %s340, 1
        %s474 = scalar_lea.vmem [#allocation2], %s473
        %p475 = scmp.lt.s32.totalorder %s28, 1
        %s476 = scalar_select %p475, %s28, 1
        %s477 = smul.addr %s476, 20
        %s478 = smul.addr %s477, 4
        %s479 = scalar_lea.vmem %s0, %s478
        %p480 = scmp.lt.s32.totalorder %s28, 1
        %s481 = scalar_select %p480, %s28, 1
        %s482 = smul.addr %s481, 8
        %s483 = smul.addr %s482, 4
        %s484 = scalar_lea.vmem %s1, %s483
        %v486 = vld [vmem:[%s479] sm:$0xf]
        %v487 = vld [vmem:[%s479 + $0x4] sm:$0x1]
        %v488 = vld [vmem:[%s479 + $0x8] sm:$0xf]
        %v489 = vld [vmem:[%s479 + $0xc] sm:$0x1]
        %v490 = vld [vmem:[%s479 + $0x10] sm:$0xf]
        %v491 = vld [vmem:[%s479 + $0x14] sm:$0x1]
        %v492 = vld [vmem:[%s479 + $0x18] sm:$0xf]
        %v493 = vld [vmem:[%s479 + $0x1c] sm:$0x1]
        %v494 = vld [vmem:[%s479 + $0x20] sm:$0xf]
        %v495 = vld [vmem:[%s479 + $0x24] sm:$0x1]
        %v496 = vld [vmem:[%s479 + $0x28] sm:$0xf]
        %v497 = vld [vmem:[%s479 + $0x2c] sm:$0x1]
        %v498 = vld [vmem:[%s479 + $0x30] sm:$0xf]
        %v499 = vld [vmem:[%s479 + $0x34] sm:$0x1]
        %v500 = vld [vmem:[%s479 + $0x38] sm:$0xf]
        %v501 = vld [vmem:[%s479 + $0x3c] sm:$0x1]
        %v502 = vld [vmem:[%s479 + $0x40] sm:$0xf]
        %v503 = vld [vmem:[%s479 + $0x44] sm:$0x1]
        %v504 = vld [vmem:[%s479 + $0x48] sm:$0xf]
        %v505 = vld [vmem:[%s479 + $0x4c] sm:$0x1]
        %v506 = vunpack.c.l.bf16 %v486
        %v507 = vunpack.c.l.bf16 %v487
        %v508 = vunpack.c.l.bf16 %v488
        %v509 = vunpack.c.l.bf16 %v489
        %v510 = vunpack.c.l.bf16 %v490
        %v511 = vunpack.c.l.bf16 %v491
        %v512 = vunpack.c.l.bf16 %v492
        %v513 = vunpack.c.l.bf16 %v493
        %v514 = vunpack.c.l.bf16 %v494
        %v515 = vunpack.c.l.bf16 %v495
        %v516 = vunpack.c.l.bf16 %v496
        %v517 = vunpack.c.l.bf16 %v497
        %v518 = vunpack.c.l.bf16 %v498
        %v519 = vunpack.c.l.bf16 %v499
        %v520 = vunpack.c.l.bf16 %v500
        %v521 = vunpack.c.l.bf16 %v501
        %v522 = vunpack.c.l.bf16 %v502
        %v523 = vunpack.c.l.bf16 %v503
        %v524 = vunpack.c.l.bf16 %v504
        %v525 = vunpack.c.l.bf16 %v505
        %v526 = vld [vmem:[%s2] sm:$0x1]
        %v528 = vlaneseq
        %v529 = vshrl.u32 %v528, 7
        %v530 = vsub.s32 0, %v529
        %v531 = vrot.slane %v526, %v530
        %v533 = vmul.f32 %v506, %v531
        %v534 = vmul.f32 %v508, %v531
        %v535 = vmul.f32 %v510, %v531
        %v536 = vmul.f32 %v512, %v531
        %v537 = vmul.f32 %v514, %v531
        %v538 = vmul.f32 %v516, %v531
        %v539 = vmul.f32 %v518, %v531
        %v540 = vmul.f32 %v520, %v531
        %v541 = vadd.f32 %v533, 0.0
        %v542 = vadd.f32 %v534, 0.0
        %v543 = vadd.f32 %v535, 0.0
        %v544 = vadd.f32 %v536, 0.0
        %v545 = vadd.f32 %v537, 0.0
        %v546 = vadd.f32 %v538, 0.0
        %v547 = vadd.f32 %v539, 0.0
        %v548 = vadd.f32 %v540, 0.0
        %s549 = scalar_lea.vmem %s2, 1
        %v550 = vld [vmem:[%s549] sm:$0x1]
        %v552 = vlaneseq
        %v553 = vshrl.u32 %v552, 7
        %v554 = vsub.s32 0, %v553
        %v555 = vrot.slane %v550, %v554
        %v557 = vmul.f32 %v506, %v555
        %v558 = vmul.f32 %v507, %v555
        %v559 = vmul.f32 %v508, %v555
        %v560 = vmul.f32 %v509, %v555
        %v561 = vmul.f32 %v510, %v555
        %v562 = vmul.f32 %v511, %v555
        %v563 = vmul.f32 %v512, %v555
        %v564 = vmul.f32 %v513, %v555
        %v565 = vmul.f32 %v514, %v555
        %v566 = vmul.f32 %v515, %v555
        %v567 = vmul.f32 %v516, %v555
        %v568 = vmul.f32 %v517, %v555
        %v569 = vmul.f32 %v518, %v555
        %v570 = vmul.f32 %v519, %v555
        %v571 = vmul.f32 %v520, %v555
        %v572 = vmul.f32 %v521, %v555
        %vm589 = vcmask 1046528
        %v590 = vrot.slane %v557, 1
        %v591 = vrot.slane %v558, 1
        %v592 = vsel %vm589, %v590, %v591
        %v593 = vrot.slane %v559, 1
        %v594 = vrot.slane %v560, 1
        %v595 = vsel %vm589, %v593, %v594
        %v596 = vrot.slane %v561, 1
        %v597 = vrot.slane %v562, 1
        %v598 = vsel %vm589, %v596, %v597
        %v599 = vrot.slane %v563, 1
        %v600 = vrot.slane %v564, 1
        %v601 = vsel %vm589, %v599, %v600
        %v602 = vrot.slane %v565, 1
        %v603 = vrot.slane %v566, 1
        %v604 = vsel %vm589, %v602, %v603
        %v605 = vrot.slane %v567, 1
        %v606 = vrot.slane %v568, 1
        %v607 = vsel %vm589, %v605, %v606
        %v608 = vrot.slane %v569, 1
        %v609 = vrot.slane %v570, 1
        %v610 = vsel %vm589, %v608, %v609
        %v611 = vrot.slane %v571, 1
        %v612 = vrot.slane %v572, 1
        %v613 = vsel %vm589, %v611, %v612
        %v622 = vadd.f32 %v541, %v592
        %v623 = vadd.f32 %v542, %v595
        %v624 = vadd.f32 %v543, %v598
        %v625 = vadd.f32 %v544, %v601
        %v626 = vadd.f32 %v545, %v604
        %v627 = vadd.f32 %v546, %v607
        %v628 = vadd.f32 %v547, %v610
        %v629 = vadd.f32 %v548, %v613
        %s630 = scalar_lea.vmem %s2, 2
        %v631 = vld [vmem:[%s630] sm:$0x1]
        %v633 = vlaneseq
        %v634 = vshrl.u32 %v633, 7
        %v635 = vsub.s32 0, %v634
        %v636 = vrot.slane %v631, %v635
        %v638 = vmul.f32 %v506, %v636
        %v639 = vmul.f32 %v507, %v636
        %v640 = vmul.f32 %v508, %v636
        %v641 = vmul.f32 %v509, %v636
        %v642 = vmul.f32 %v510, %v636
        %v643 = vmul.f32 %v511, %v636
        %v644 = vmul.f32 %v512, %v636
        %v645 = vmul.f32 %v513, %v636
        %v646 = vmul.f32 %v514, %v636
        %v647 = vmul.f32 %v515, %v636
        %v648 = vmul.f32 %v516, %v636
        %v649 = vmul.f32 %v517, %v636
        %v650 = vmul.f32 %v518, %v636
        %v651 = vmul.f32 %v519, %v636
        %v652 = vmul.f32 %v520, %v636
        %v653 = vmul.f32 %v521, %v636
        %vm670 = vcmask 1045504
        %v671 = vrot.slane %v638, 2
        %v672 = vrot.slane %v639, 2
        %v673 = vsel %vm670, %v671, %v672
        %v674 = vrot.slane %v640, 2
        %v675 = vrot.slane %v641, 2
        %v676 = vsel %vm670, %v674, %v675
        %v677 = vrot.slane %v642, 2
        %v678 = vrot.slane %v643, 2
        %v679 = vsel %vm670, %v677, %v678
        %v680 = vrot.slane %v644, 2
        %v681 = vrot.slane %v645, 2
        %v682 = vsel %vm670, %v680, %v681
        %v683 = vrot.slane %v646, 2
        %v684 = vrot.slane %v647, 2
        %v685 = vsel %vm670, %v683, %v684
        %v686 = vrot.slane %v648, 2
        %v687 = vrot.slane %v649, 2
        %v688 = vsel %vm670, %v686, %v687
        %v689 = vrot.slane %v650, 2
        %v690 = vrot.slane %v651, 2
        %v691 = vsel %vm670, %v689, %v690
        %v692 = vrot.slane %v652, 2
        %v693 = vrot.slane %v653, 2
        %v694 = vsel %vm670, %v692, %v693
        %v703 = vadd.f32 %v622, %v673
        %v704 = vadd.f32 %v623, %v676
        %v705 = vadd.f32 %v624, %v679
        %v706 = vadd.f32 %v625, %v682
        %v707 = vadd.f32 %v626, %v685
        %v708 = vadd.f32 %v627, %v688
        %v709 = vadd.f32 %v628, %v691
        %v710 = vadd.f32 %v629, %v694
        %s711 = scalar_lea.vmem %s2, 3
        %v712 = vld [vmem:[%s711] sm:$0x1]
        %v714 = vlaneseq
        %v715 = vshrl.u32 %v714, 7
        %v716 = vsub.s32 0, %v715
        %v717 = vrot.slane %v712, %v716
        %v719 = vmul.f32 %v508, %v717
        %v720 = vmul.f32 %v510, %v717
        %v721 = vmul.f32 %v512, %v717
        %v722 = vmul.f32 %v514, %v717
        %v723 = vmul.f32 %v516, %v717
        %v724 = vmul.f32 %v518, %v717
        %v725 = vmul.f32 %v520, %v717
        %v726 = vmul.f32 %v522, %v717
        %v727 = vadd.f32 %v703, %v719
        %v728 = vadd.f32 %v704, %v720
        %v729 = vadd.f32 %v705, %v721
        %v730 = vadd.f32 %v706, %v722
        %v731 = vadd.f32 %v707, %v723
        %v732 = vadd.f32 %v708, %v724
        %v733 = vadd.f32 %v709, %v725
        %v734 = vadd.f32 %v710, %v726
        %s735 = scalar_lea.vmem %s2, 4
        %v736 = vld [vmem:[%s735] sm:$0x1]
        %v738 = vlaneseq
        %v739 = vshrl.u32 %v738, 7
        %v740 = vsub.s32 0, %v739
        %v741 = vrot.slane %v736, %v740
        %v743 = vmul.f32 %v508, %v741
        %v744 = vmul.f32 %v509, %v741
        %v745 = vmul.f32 %v510, %v741
        %v746 = vmul.f32 %v511, %v741
        %v747 = vmul.f32 %v512, %v741
        %v748 = vmul.f32 %v513, %v741
        %v749 = vmul.f32 %v514, %v741
        %v750 = vmul.f32 %v515, %v741
        %v751 = vmul.f32 %v516, %v741
        %v752 = vmul.f32 %v517, %v741
        %v753 = vmul.f32 %v518, %v741
        %v754 = vmul.f32 %v519, %v741
        %v755 = vmul.f32 %v520, %v741
        %v756 = vmul.f32 %v521, %v741
        %v757 = vmul.f32 %v522, %v741
        %v758 = vmul.f32 %v523, %v741
        %v775 = vrot.slane %v743, 1
        %v776 = vrot.slane %v744, 1
        %v777 = vsel %vm589, %v775, %v776
        %v778 = vrot.slane %v745, 1
        %v779 = vrot.slane %v746, 1
        %v780 = vsel %vm589, %v778, %v779
        %v781 = vrot.slane %v747, 1
        %v782 = vrot.slane %v748, 1
        %v783 = vsel %vm589, %v781, %v782
        %v784 = vrot.slane %v749, 1
        %v785 = vrot.slane %v750, 1
        %v786 = vsel %vm589, %v784, %v785
        %v787 = vrot.slane %v751, 1
        %v788 = vrot.slane %v752, 1
        %v789 = vsel %vm589, %v787, %v788
        %v790 = vrot.slane %v753, 1
        %v791 = vrot.slane %v754, 1
        %v792 = vsel %vm589, %v790, %v791
        %v793 = vrot.slane %v755, 1
        %v794 = vrot.slane %v756, 1
        %v795 = vsel %vm589, %v793, %v794
        %v796 = vrot.slane %v757, 1
        %v797 = vrot.slane %v758, 1
        %v798 = vsel %vm589, %v796, %v797
        %v807 = vadd.f32 %v727, %v777
        %v808 = vadd.f32 %v728, %v780
        %v809 = vadd.f32 %v729, %v783
        %v810 = vadd.f32 %v730, %v786
        %v811 = vadd.f32 %v731, %v789
        %v812 = vadd.f32 %v732, %v792
        %v813 = vadd.f32 %v733, %v795
        %v814 = vadd.f32 %v734, %v798
        %s815 = scalar_lea.vmem %s2, 5
        %v816 = vld [vmem:[%s815] sm:$0x1]
        %v818 = vlaneseq
        %v819 = vshrl.u32 %v818, 7
        %v820 = vsub.s32 0, %v819
        %v821 = vrot.slane %v816, %v820
        %v823 = vmul.f32 %v508, %v821
        %v824 = vmul.f32 %v509, %v821
        %v825 = vmul.f32 %v510, %v821
        %v826 = vmul.f32 %v511, %v821
        %v827 = vmul.f32 %v512, %v821
        %v828 = vmul.f32 %v513, %v821
        %v829 = vmul.f32 %v514, %v821
        %v830 = vmul.f32 %v515, %v821
        %v831 = vmul.f32 %v516, %v821
        %v832 = vmul.f32 %v517, %v821
        %v833 = vmul.f32 %v518, %v821
        %v834 = vmul.f32 %v519, %v821
        %v835 = vmul.f32 %v520, %v821
        %v836 = vmul.f32 %v521, %v821
        %v837 = vmul.f32 %v522, %v821
        %v838 = vmul.f32 %v523, %v821
        %v855 = vrot.slane %v823, 2
        %v856 = vrot.slane %v824, 2
        %v857 = vsel %vm670, %v855, %v856
        %v858 = vrot.slane %v825, 2
        %v859 = vrot.slane %v826, 2
        %v860 = vsel %vm670, %v858, %v859
        %v861 = vrot.slane %v827, 2
        %v862 = vrot.slane %v828, 2
        %v863 = vsel %vm670, %v861, %v862
        %v864 = vrot.slane %v829, 2
        %v865 = vrot.slane %v830, 2
        %v866 = vsel %vm670, %v864, %v865
        %v867 = vrot.slane %v831, 2
        %v868 = vrot.slane %v832, 2
        %v869 = vsel %vm670, %v867, %v868
        %v870 = vrot.slane %v833, 2
        %v871 = vrot.slane %v834, 2
        %v872 = vsel %vm670, %v870, %v871
        %v873 = vrot.slane %v835, 2
        %v874 = vrot.slane %v836, 2
        %v875 = vsel %vm670, %v873, %v874
        %v876 = vrot.slane %v837, 2
        %v877 = vrot.slane %v838, 2
        %v878 = vsel %vm670, %v876, %v877
        %v887 = vadd.f32 %v807, %v857
        %v888 = vadd.f32 %v808, %v860
        %v889 = vadd.f32 %v809, %v863
        %v890 = vadd.f32 %v810, %v866
        %v891 = vadd.f32 %v811, %v869
        %v892 = vadd.f32 %v812, %v872
        %v893 = vadd.f32 %v813, %v875
        %v894 = vadd.f32 %v814, %v878
        %s895 = scalar_lea.vmem %s2, 6
        %v896 = vld [vmem:[%s895] sm:$0x1]
        %v898 = vlaneseq
        %v899 = vshrl.u32 %v898, 7
        %v900 = vsub.s32 0, %v899
        %v901 = vrot.slane %v896, %v900
        %v903 = vmul.f32 %v510, %v901
        %v904 = vmul.f32 %v512, %v901
        %v905 = vmul.f32 %v514, %v901
        %v906 = vmul.f32 %v516, %v901
        %v907 = vmul.f32 %v518, %v901
        %v908 = vmul.f32 %v520, %v901
        %v909 = vmul.f32 %v522, %v901
        %v910 = vmul.f32 %v524, %v901
        %v911 = vadd.f32 %v887, %v903
        %v912 = vadd.f32 %v888, %v904
        %v913 = vadd.f32 %v889, %v905
        %v914 = vadd.f32 %v890, %v906
        %v915 = vadd.f32 %v891, %v907
        %v916 = vadd.f32 %v892, %v908
        %v917 = vadd.f32 %v893, %v909
        %v918 = vadd.f32 %v894, %v910
        %s919 = scalar_lea.vmem %s2, 7
        %v920 = vld [vmem:[%s919] sm:$0x1]
        %v922 = vlaneseq
        %v923 = vshrl.u32 %v922, 7
        %v924 = vsub.s32 0, %v923
        %v925 = vrot.slane %v920, %v924
        %v927 = vmul.f32 %v510, %v925
        %v928 = vmul.f32 %v511, %v925
        %v929 = vmul.f32 %v512, %v925
        %v930 = vmul.f32 %v513, %v925
        %v931 = vmul.f32 %v514, %v925
        %v932 = vmul.f32 %v515, %v925
        %v933 = vmul.f32 %v516, %v925
        %v934 = vmul.f32 %v517, %v925
        %v935 = vmul.f32 %v518, %v925
        %v936 = vmul.f32 %v519, %v925
        %v937 = vmul.f32 %v520, %v925
        %v938 = vmul.f32 %v521, %v925
        %v939 = vmul.f32 %v522, %v925
        %v940 = vmul.f32 %v523, %v925
        %v941 = vmul.f32 %v524, %v925
        %v942 = vmul.f32 %v525, %v925
        %v959 = vrot.slane %v927, 1
        %v960 = vrot.slane %v928, 1
        %v961 = vsel %vm589, %v959, %v960
        %v962 = vrot.slane %v929, 1
        %v963 = vrot.slane %v930, 1
        %v964 = vsel %vm589, %v962, %v963
        %v965 = vrot.slane %v931, 1
        %v966 = vrot.slane %v932, 1
        %v967 = vsel %vm589, %v965, %v966
        %v968 = vrot.slane %v933, 1
        %v969 = vrot.slane %v934, 1
        %v970 = vsel %vm589, %v968, %v969
        %v971 = vrot.slane %v935, 1
        %v972 = vrot.slane %v936, 1
        %v973 = vsel %vm589, %v971, %v972
        %v974 = vrot.slane %v937, 1
        %v975 = vrot.slane %v938, 1
        %v976 = vsel %vm589, %v974, %v975
        %v977 = vrot.slane %v939, 1
        %v978 = vrot.slane %v940, 1
        %v979 = vsel %vm589, %v977, %v978
        %v980 = vrot.slane %v941, 1
        %v981 = vrot.slane %v942, 1
        %v982 = vsel %vm589, %v980, %v981
        %v991 = vadd.f32 %v911, %v961
        %v992 = vadd.f32 %v912, %v964
        %v993 = vadd.f32 %v913, %v967
        %v994 = vadd.f32 %v914, %v970
        %v995 = vadd.f32 %v915, %v973
        %v996 = vadd.f32 %v916, %v976
        %v997 = vadd.f32 %v917, %v979
        %v998 = vadd.f32 %v918, %v982
        %s999 = scalar_lea.vmem %s2, 8
        %v1000 = vld [vmem:[%s999] sm:$0x1]
        %v1002 = vlaneseq
        %v1003 = vshrl.u32 %v1002, 7
        %v1004 = vsub.s32 0, %v1003
        %v1005 = vrot.slane %v1000, %v1004
        %v1007 = vmul.f32 %v510, %v1005
        %v1008 = vmul.f32 %v511, %v1005
        %v1009 = vmul.f32 %v512, %v1005
        %v1010 = vmul.f32 %v513, %v1005
        %v1011 = vmul.f32 %v514, %v1005
        %v1012 = vmul.f32 %v515, %v1005
        %v1013 = vmul.f32 %v516, %v1005
        %v1014 = vmul.f32 %v517, %v1005
        %v1015 = vmul.f32 %v518, %v1005
        %v1016 = vmul.f32 %v519, %v1005
        %v1017 = vmul.f32 %v520, %v1005
        %v1018 = vmul.f32 %v521, %v1005
        %v1019 = vmul.f32 %v522, %v1005
        %v1020 = vmul.f32 %v523, %v1005
        %v1021 = vmul.f32 %v524, %v1005
        %v1022 = vmul.f32 %v525, %v1005
        %v1039 = vrot.slane %v1007, 2
        %v1040 = vrot.slane %v1008, 2
        %v1041 = vsel %vm670, %v1039, %v1040
        %v1042 = vrot.slane %v1009, 2
        %v1043 = vrot.slane %v1010, 2
        %v1044 = vsel %vm670, %v1042, %v1043
        %v1045 = vrot.slane %v1011, 2
        %v1046 = vrot.slane %v1012, 2
        %v1047 = vsel %vm670, %v1045, %v1046
        %v1048 = vrot.slane %v1013, 2
        %v1049 = vrot.slane %v1014, 2
        %v1050 = vsel %vm670, %v1048, %v1049
        %v1051 = vrot.slane %v1015, 2
        %v1052 = vrot.slane %v1016, 2
        %v1053 = vsel %vm670, %v1051, %v1052
        %v1054 = vrot.slane %v1017, 2
        %v1055 = vrot.slane %v1018, 2
        %v1056 = vsel %vm670, %v1054, %v1055
        %v1057 = vrot.slane %v1019, 2
        %v1058 = vrot.slane %v1020, 2
        %v1059 = vsel %vm670, %v1057, %v1058
        %v1060 = vrot.slane %v1021, 2
        %v1061 = vrot.slane %v1022, 2
        %v1062 = vsel %vm670, %v1060, %v1061
        %v1071 = vadd.f32 %v991, %v1041
        %v1072 = vadd.f32 %v992, %v1044
        %v1073 = vadd.f32 %v993, %v1047
        %v1074 = vadd.f32 %v994, %v1050
        %v1075 = vadd.f32 %v995, %v1053
        %v1076 = vadd.f32 %v996, %v1056
        %v1077 = vadd.f32 %v997, %v1059
        %v1078 = vadd.f32 %v998, %v1062
        %v1079 = vld [vmem:[%s3] sm:$0x1]
        %v1081 = vlaneseq
        %v1082 = vshrl.u32 %v1081, 7
        %v1083 = vsub.s32 0, %v1082
        %v1084 = vrot.slane %v1079, %v1083
        %v1086 = vadd.f32 %v1071, %v1084
        %v1087 = vadd.f32 %v1072, %v1084
        %v1088 = vadd.f32 %v1073, %v1084
        %v1089 = vadd.f32 %v1074, %v1084
        %v1090 = vadd.f32 %v1075, %v1084
        %v1091 = vadd.f32 %v1076, %v1084
        %v1092 = vadd.f32 %v1077, %v1084
        %v1093 = vadd.f32 %v1078, %v1084
        %v1094 = vxor.u32 %v1086, 2147483648
        %v1095 = vxor.u32 %v1087, 2147483648
        %v1096 = vxor.u32 %v1088, 2147483648
        %v1097 = vxor.u32 %v1089, 2147483648
        %v1098 = vxor.u32 %v1090, 2147483648
        %v1099 = vxor.u32 %v1091, 2147483648
        %v1100 = vxor.u32 %v1092, 2147483648
        %v1101 = vxor.u32 %v1093, 2147483648
        %v1102 = vmul.f32 %v1094, 1.442695
        %v1103 = vpow.pop %v1102
        %v1104 = vmul.f32 %v1095, 1.442695
        %v1105 = vpow.pop %v1104
        %v1106 = vmul.f32 %v1096, 1.442695
        %v1107 = vpow.pop %v1106
        %v1108 = vmul.f32 %v1097, 1.442695
        %v1109 = vpow.pop %v1108
        %v1110 = vmul.f32 %v1098, 1.442695
        %v1111 = vpow.pop %v1110
        %v1112 = vmul.f32 %v1099, 1.442695
        %v1113 = vpow.pop %v1112
        %v1114 = vmul.f32 %v1100, 1.442695
        %v1115 = vpow.pop %v1114
        %v1116 = vmul.f32 %v1101, 1.442695
        %v1117 = vpow.pop %v1116
        %v1118 = vadd.f32 %v1103, 1.0
        %v1119 = vadd.f32 %v1105, 1.0
        %v1120 = vadd.f32 %v1107, 1.0
        %v1121 = vadd.f32 %v1109, 1.0
        %v1122 = vadd.f32 %v1111, 1.0
        %v1123 = vadd.f32 %v1113, 1.0
        %v1124 = vadd.f32 %v1115, 1.0
        %v1125 = vadd.f32 %v1117, 1.0
        %v1126 = vrcp.pop %v1118
        %v1127 = vmul.f32 1.0, %v1126
        %v1128 = vrcp.pop %v1119
        %v1129 = vmul.f32 1.0, %v1128
        %v1130 = vrcp.pop %v1120
        %v1131 = vmul.f32 1.0, %v1130
        %v1132 = vrcp.pop %v1121
        %v1133 = vmul.f32 1.0, %v1132
        %v1134 = vrcp.pop %v1122
        %v1135 = vmul.f32 1.0, %v1134
        %v1136 = vrcp.pop %v1123
        %v1137 = vmul.f32 1.0, %v1136
        %v1138 = vrcp.pop %v1124
        %v1139 = vmul.f32 1.0, %v1138
        %v1140 = vrcp.pop %v1125
        %v1141 = vmul.f32 1.0, %v1140
        %v1142 = vmul.f32 %v1086, %v1127
        %v1143 = vmul.f32 %v1087, %v1129
        %v1144 = vmul.f32 %v1088, %v1131
        %v1145 = vmul.f32 %v1089, %v1133
        %v1146 = vmul.f32 %v1090, %v1135
        %v1147 = vmul.f32 %v1091, %v1137
        %v1148 = vmul.f32 %v1092, %v1139
        %v1149 = vmul.f32 %v1093, %v1141
        %vm1150 = vcmask 523264
        %v1151 = vsel %vm1150, %v1142, 0.0
        %v1152 = vsel %vm1150, %v1143, 0.0
        %v1153 = vadd.f32 %v1151, %v1152
        %v1154 = vsel %vm1150, %v1144, 0.0
        %v1155 = vadd.f32 %v1153, %v1154
        %v1156 = vsel %vm1150, %v1145, 0.0
        %v1157 = vadd.f32 %v1155, %v1156
        %v1158 = vsel %vm1150, %v1146, 0.0
        %v1159 = vadd.f32 %v1157, %v1158
        %v1160 = vsel %vm1150, %v1147, 0.0
        %v1161 = vadd.f32 %v1159, %v1160
        %v1162 = vsel %vm1150, %v1148, 0.0
        %v1163 = vadd.f32 %v1161, %v1162
        %v1164 = vsel %vm1150, %v1149, 0.0
        %v1165 = vadd.f32 %v1163, %v1164
        %v1166 = vrot.slane %v1165, 4
        %v1167 = vadd.f32 %v1165, %v1166
        %v1168 = vrot.slane %v1167, 2
        %v1169 = vadd.f32 %v1167, %v1168
        %v1170 = vrot.slane %v1169, 1
        %v1171 = vadd.f32 %v1169, %v1170
        %v1172 = vrcp.pop 64.0
        %v1173 = vmul.f32 %v1171, %v1172
        %v1174 = vld [vmem:[%s4] sm:$0xff]
        %v1175 = vld [vmem:[%s4 + $0x8] sm:$0xff]
        %v1176 = vld [vmem:[%s4 + $0x10] sm:$0xff]
        %v1177 = vld [vmem:[%s4 + $0x18] sm:$0xff]
        %v1178 = vld [vmem:[%s4 + $0x20] sm:$0xff]
        %v1179 = vld [vmem:[%s4 + $0x28] sm:$0xff]
        %v1180 = vld [vmem:[%s4 + $0x30] sm:$0xff]
        %v1181 = vld [vmem:[%s4 + $0x38] sm:$0xff]
        %v1182 = vld [vmem:[%s5] sm:$0x1]
        %v1184 = vsel %vm1150, %v1173, 0
        %1186 = vmatprep.subr.mxu0 0.0
        %1187 = vmatpush1.msra.mxu0 0.0
        %1188 = vmatprep.subr.mxu0 0.0
        %1189 = vmatpush1.msra.mxu0 0.0
        %1190 = vmatprep.subr.mxu0 0.0
        %1191 = vmatpush1.msra.mxu0 0.0
        %1192 = vmatprep.subr.mxu0 0.0
        %1193 = vmatpush1.msra.mxu0 0.0
        %1194 = vmatprep.subr.mxu0 0.0
        %1195 = vmatpush1.msra.mxu0 0.0
        %1196 = vmatprep.subr.mxu0 0.0
        %1197 = vmatpush1.msra.mxu0 0.0
        %1198 = vmatprep.subr.mxu0 0.0
        %1199 = vmatpush1.msra.mxu0 0.0
        %1200 = vmatprep.subr.mxu0 0.0
        %1201 = vmatpush1.msra.mxu0 0.0
        %1202 = vmatprep.subr.mxu0 0.0
        %1203 = vmatpush1.msra.mxu0 %v1181
        %1204 = vmatprep.subr.mxu0 0.0
        %1205 = vmatpush1.msra.mxu0 %v1180
        %1206 = vmatprep.subr.mxu0 0.0
        %1207 = vmatpush1.msra.mxu0 %v1179
        %1208 = vmatprep.subr.mxu0 0.0
        %1209 = vmatpush1.msra.mxu0 %v1178
        %1210 = vmatprep.subr.mxu0 0.0
        %1211 = vmatpush1.msra.mxu0 %v1177
        %1212 = vmatprep.subr.mxu0 0.0
        %1213 = vmatpush1.msra.mxu0 %v1176
        %1214 = vmatprep.subr.mxu0 0.0
        %1215 = vmatpush1.msra.mxu0 %v1175
        %1216 = vmatprep.subr.mxu0 0.0
        %1217 = vmatpush1.msra.mxu0 %v1174
        %1218 = vmatprep.subr.mxu0 0.0
        %1219 = vmatpush2.msra.mxu0 0.0
        %1220 = vmatprep.subr.mxu0 0.0
        %1221 = vmatpush2.msra.mxu0 0.0
        %1222 = vmatprep.subr.mxu0 0.0
        %1223 = vmatpush2.msra.mxu0 0.0
        %1224 = vmatprep.subr.mxu0 0.0
        %1225 = vmatpush2.msra.mxu0 0.0
        %1226 = vmatprep.subr.mxu0 0.0
        %1227 = vmatpush2.msra.mxu0 0.0
        %1228 = vmatprep.subr.mxu0 0.0
        %1229 = vmatpush2.msra.mxu0 0.0
        %1230 = vmatprep.subr.mxu0 0.0
        %1231 = vmatpush2.msra.mxu0 0.0
        %1232 = vmatprep.subr.mxu0 0.0
        %1233 = vmatpush2.msra.mxu0 0.0
        %1234 = vmatprep.subr.mxu0 0.0
        %1235 = vmatpush2.msra.mxu0 0.0
        %1236 = vmatprep.subr.mxu0 0.0
        %1237 = vmatpush2.msra.mxu0 0.0
        %1238 = vmatprep.subr.mxu0 0.0
        %1239 = vmatpush2.msra.mxu0 0.0
        %1240 = vmatprep.subr.mxu0 0.0
        %1241 = vmatpush2.msra.mxu0 0.0
        %1242 = vmatprep.subr.mxu0 0.0
        %1243 = vmatpush2.msra.mxu0 0.0
        %1244 = vmatprep.subr.mxu0 0.0
        %1245 = vmatpush2.msra.mxu0 0.0
        %1246 = vmatprep.subr.mxu0 0.0
        %1247 = vmatpush2.msra.mxu0 0.0
        %1248 = vmatprep.subr.mxu0 0.0
        %1249 = vmatpush2.msra.mxu0 0.0
        %1250 = vmatprep.mubr.f32.mxu0 0.0
        %1251 = vmatmul.mubr.f32.gmra.mxu0 %v1184
        %v1252 = vpop.f32.mrf.mxu0
        %v1253 = vadd.f32 %v1182, %v1252
        %v1254 = vpop.f32.mrf.mxu0
        %1255 = vdwg.mxu0
        %v1256 = vxor.u32 %v1253, 2147483648
        %v1257 = vmul.f32 %v1256, 1.442695
        %v1258 = vpow.pop %v1257
        %v1259 = vadd.f32 %v1258, 1.0
        %v1260 = vrcp.pop %v1259
        %v1261 = vmul.f32 1.0, %v1260
        %v1262 = vmul.f32 %v1253, %v1261
        %v1263 = vld [vmem:[%s6] sm:$0xf]
        %v1264 = vld [vmem:[%s7] sm:$0x1]
        %vm1265 = vcmask 31744
        %v1267 = vsel %vm1265, %v1262, 0
        %vm1269 = vcmask 1043456
        %v1271 = vsel %vm1269, %v1263, 0
        %1273 = vmatprep.subr.mxu0 0.0
        %1274 = vmatpush1.msra.mxu0 0.0
        %1275 = vmatprep.subr.mxu0 0.0
        %1276 = vmatpush1.msra.mxu0 0.0
        %1277 = vmatprep.subr.mxu0 0.0
        %1278 = vmatpush1.msra.mxu0 0.0
        %1279 = vmatprep.subr.mxu0 0.0
        %1280 = vmatpush1.msra.mxu0 0.0
        %1281 = vmatprep.subr.mxu0 0.0
        %1282 = vmatpush1.msra.mxu0 0.0
        %1283 = vmatprep.subr.mxu0 0.0
        %1284 = vmatpush1.msra.mxu0 0.0
        %1285 = vmatprep.subr.mxu0 0.0
        %1286 = vmatpush1.msra.mxu0 0.0
        %1287 = vmatprep.subr.mxu0 0.0
        %1288 = vmatpush1.msra.mxu0 0.0
        %1289 = vmatprep.subr.mxu0 0.0
        %1290 = vmatpush1.msra.mxu0 0.0
        %1291 = vmatprep.subr.mxu0 0.0
        %1292 = vmatpush1.msra.mxu0 0.0
        %1293 = vmatprep.subr.mxu0 0.0
        %1294 = vmatpush1.msra.mxu0 0.0
        %1295 = vmatprep.subr.mxu0 0.0
        %1296 = vmatpush1.msra.mxu0 0.0
        %1297 = vmatprep.subr.mxu0 0.0
        %1298 = vmatpush1.msra.mxu0 0.0
        %1299 = vmatprep.subr.mxu0 0.0
        %1300 = vmatpush1.msra.mxu0 0.0
        %1301 = vmatprep.subr.mxu0 0.0
        %1302 = vmatpush1.msra.mxu0 0.0
        %1303 = vmatprep.subr.mxu0 0.0
        %1304 = vmatpush1.msra.mxu0 %v1271
        %1305 = vmatprep.subr.mxu0 0.0
        %1306 = vmatpush2.msra.mxu0 0.0
        %1307 = vmatprep.subr.mxu0 0.0
        %1308 = vmatpush2.msra.mxu0 0.0
        %1309 = vmatprep.subr.mxu0 0.0
        %1310 = vmatpush2.msra.mxu0 0.0
        %1311 = vmatprep.subr.mxu0 0.0
        %1312 = vmatpush2.msra.mxu0 0.0
        %1313 = vmatprep.subr.mxu0 0.0
        %1314 = vmatpush2.msra.mxu0 0.0
        %1315 = vmatprep.subr.mxu0 0.0
        %1316 = vmatpush2.msra.mxu0 0.0
        %1317 = vmatprep.subr.mxu0 0.0
        %1318 = vmatpush2.msra.mxu0 0.0
        %1319 = vmatprep.subr.mxu0 0.0
        %1320 = vmatpush2.msra.mxu0 0.0
        %1321 = vmatprep.subr.mxu0 0.0
        %1322 = vmatpush2.msra.mxu0 0.0
        %1323 = vmatprep.subr.mxu0 0.0
        %1324 = vmatpush2.msra.mxu0 0.0
        %1325 = vmatprep.subr.mxu0 0.0
        %1326 = vmatpush2.msra.mxu0 0.0
        %1327 = vmatprep.subr.mxu0 0.0
        %1328 = vmatpush2.msra.mxu0 0.0
        %1329 = vmatprep.subr.mxu0 0.0
        %1330 = vmatpush2.msra.mxu0 0.0
        %1331 = vmatprep.subr.mxu0 0.0
        %1332 = vmatpush2.msra.mxu0 0.0
        %1333 = vmatprep.subr.mxu0 0.0
        %1334 = vmatpush2.msra.mxu0 0.0
        %1335 = vmatprep.subr.mxu0 0.0
        %1336 = vmatpush2.msra.mxu0 0.0
        %1337 = vmatprep.mubr.f32.mxu0 0.0
        %1338 = vmatmul.mubr.f32.gmra.mxu0 %v1267
        %v1339 = vpop.f32.mrf.mxu0
        %v1340 = vadd.f32 %v1264, %v1339
        %v1341 = vpop.f32.mrf.mxu0
        %1342 = vdwg.mxu0
        %v1343 = vxor.u32 %v1340, 2147483648
        %v1344 = vmul.f32 %v1343, 1.442695
        %v1345 = vpow.pop %v1344
        %v1346 = vadd.f32 %v1345, 1.0
        %v1347 = vrcp.pop %v1346
        %v1348 = vmul.f32 1.0, %v1347
        %v1349 = vlaneseq
        %v1350 = vshrl.u32 %v1349, 7
        %v1351 = vsub.s32 0, %v1350
        %v1352 = vrot.slane %v1348, %v1351
        %v1353 = vmul.f32 %v1142, %v1352
        %v1354 = vmul.f32 %v1143, %v1352
        %v1355 = vmul.f32 %v1144, %v1352
        %v1356 = vmul.f32 %v1145, %v1352
        %v1357 = vmul.f32 %v1146, %v1352
        %v1358 = vmul.f32 %v1147, %v1352
        %v1359 = vmul.f32 %v1148, %v1352
        %v1360 = vmul.f32 %v1149, %v1352
        %v1361 = vpack.c.bf16 %v1354, %v1353
        %v1362 = vpack.c.bf16 %v1356, %v1355
        %v1363 = vpack.c.bf16 %v1358, %v1357
        %v1364 = vpack.c.bf16 %v1360, %v1359
        %v1365 = vld [vmem:[%s8] sm:$0xf]
        %v1366 = vld [vmem:[%s8 + $0x4] sm:$0xf]
        %v1367 = vld [vmem:[%s8 + $0x8] sm:$0xf]
        %v1368 = vld [vmem:[%s8 + $0xc] sm:$0xf]
        %v1369 = vld [vmem:[%s8 + $0x10] sm:$0xf]
        %v1370 = vld [vmem:[%s8 + $0x14] sm:$0xf]
        %v1371 = vld [vmem:[%s8 + $0x18] sm:$0xf]
        %v1372 = vld [vmem:[%s8 + $0x1c] sm:$0xf]
        %v1373 = vld [vmem:[%s9] sm:$0x1]
        %v1375 = vlaneseq
        %v1376 = vshrl.u32 %v1375, 7
        %v1377 = vsub.s32 0, %v1376
        %v1378 = vrot.slane %v1373, %v1377
        %v1388 = vunpack.c.l.b16 %v1365
        %v1389 = vunpack.c.l.b16 %v1366
        %v1390 = vunpack.c.l.b16 %v1367
        %v1391 = vunpack.c.l.b16 %v1368
        %v1392 = vunpack.c.l.b16 %v1369
        %v1393 = vunpack.c.l.b16 %v1370
        %v1394 = vunpack.c.l.b16 %v1371
        %v1395 = vunpack.c.l.b16 %v1372
        %v1396 = vpack.c.b16 %v1389, %v1388
        %v1397 = vpack.c.b16 %v1391, %v1390
        %v1398 = vpack.c.b16 %v1393, %v1392
        %v1399 = vpack.c.b16 %v1395, %v1394
        %v1405 = vsel %vm1150, %v1361, 0
        %v1408 = vsel %vm1150, %v1362, 0
        %v1411 = vsel %vm1150, %v1363, 0
        %v1414 = vsel %vm1150, %v1364, 0
        %1416 = vmatprep.subr.bf16.mxu0 0
        %1417 = vmatpush1.bf16.msra.mxu0 0
        %1418 = vmatprep.subr.bf16.mxu0 0
        %1419 = vmatpush1.bf16.msra.mxu0 0
        %1420 = vmatprep.subr.bf16.mxu0 0
        %1421 = vmatpush1.bf16.msra.mxu0 0
        %1422 = vmatprep.subr.bf16.mxu0 0
        %1423 = vmatpush1.bf16.msra.mxu0 0
        %1424 = vmatprep.subr.bf16.mxu0 0
        %1425 = vmatpush1.bf16.msra.mxu0 %v1399
        %1426 = vmatprep.subr.bf16.mxu0 0
        %1427 = vmatpush1.bf16.msra.mxu0 %v1398
        %1428 = vmatprep.subr.bf16.mxu0 0
        %1429 = vmatpush1.bf16.msra.mxu0 %v1397
        %1430 = vmatprep.subr.bf16.mxu0 0
        %1431 = vmatpush1.bf16.msra.mxu0 %v1396
        %1432 = vmatprep.subr.bf16.mxu0 0
        %1433 = vmatpush2.bf16.msra.mxu0 0
        %1434 = vmatprep.subr.bf16.mxu0 0
        %1435 = vmatpush2.bf16.msra.mxu0 0
        %1436 = vmatprep.subr.bf16.mxu0 0
        %1437 = vmatpush2.bf16.msra.mxu0 0
        %1438 = vmatprep.subr.bf16.mxu0 0
        %1439 = vmatpush2.bf16.msra.mxu0 0
        %1440 = vmatprep.subr.bf16.mxu0 0
        %1441 = vmatpush2.bf16.msra.mxu0 0
        %1442 = vmatprep.subr.bf16.mxu0 0
        %1443 = vmatpush2.bf16.msra.mxu0 0
        %1444 = vmatprep.subr.bf16.mxu0 0
        %1445 = vmatpush2.bf16.msra.mxu0 0
        %1446 = vmatprep.subr.bf16.mxu0 0
        %1447 = vmatpush2.bf16.msra.mxu0 0
        %1448 = vmatprep.mubr.bf16.mxu0 0
        %1449 = vmatmul.mubr.bf16.gmra.mxu0 %v1405
        %v1450 = vpop.f32.mrf.mxu0
        %v1451 = vadd.f32 %v1378, %v1450
        %v1452 = vpop.f32.mrf.mxu0
        %v1453 = vpop.f32.mrf.mxu0
        %v1454 = vadd.f32 %v1378, %v1453
        %v1455 = vpop.f32.mrf.mxu0
        %1456 = vmatprep.mubr.bf16.mxu0 0
        %1457 = vmatmul.mubr.bf16.gmra.mxu0 %v1408
        %v1458 = vpop.f32.mrf.mxu0
        %v1459 = vadd.f32 %v1378, %v1458
        %v1460 = vpop.f32.mrf.mxu0
        %v1461 = vpop.f32.mrf.mxu0
        %v1462 = vadd.f32 %v1378, %v1461
        %v1463 = vpop.f32.mrf.mxu0
        %1464 = vmatprep.mubr.bf16.mxu0 0
        %1465 = vmatmul.mubr.bf16.gmra.mxu0 %v1411
        %v1466 = vpop.f32.mrf.mxu0
        %v1467 = vadd.f32 %v1378, %v1466
        %v1468 = vpop.f32.mrf.mxu0
        %v1469 = vpop.f32.mrf.mxu0
        %v1470 = vadd.f32 %v1378, %v1469
        %v1471 = vpop.f32.mrf.mxu0
        %1472 = vmatprep.mubr.bf16.mxu0 0
        %1473 = vmatmul.mubr.bf16.gmra.mxu0 %v1414
        %v1474 = vpop.f32.mrf.mxu0
        %v1475 = vadd.f32 %v1378, %v1474
        %v1476 = vpop.f32.mrf.mxu0
        %v1477 = vpop.f32.mrf.mxu0
        %v1478 = vadd.f32 %v1378, %v1477
        %v1479 = vpop.f32.mrf.mxu0
        %1480 = vdwg.mxu0
        %v1481 = vld [vmem:[%s484] sm:$0xf]
        %v1482 = vld [vmem:[%s484 + $0x4] sm:$0xf]
        %v1483 = vld [vmem:[%s484 + $0x8] sm:$0xf]
        %v1484 = vld [vmem:[%s484 + $0xc] sm:$0xf]
        %v1485 = vld [vmem:[%s484 + $0x10] sm:$0xf]
        %v1486 = vld [vmem:[%s484 + $0x14] sm:$0xf]
        %v1487 = vld [vmem:[%s484 + $0x18] sm:$0xf]
        %v1488 = vld [vmem:[%s484 + $0x1c] sm:$0xf]
        %v1489 = vunpack.c.l.bf16 %v1481
        %v1490 = vunpack.c.l.bf16 %v1482
        %v1491 = vunpack.c.l.bf16 %v1483
        %v1492 = vunpack.c.l.bf16 %v1484
        %v1493 = vunpack.c.l.bf16 %v1485
        %v1494 = vunpack.c.l.bf16 %v1486
        %v1495 = vunpack.c.l.bf16 %v1487
        %v1496 = vunpack.c.l.bf16 %v1488
        %v1497 = vadd.f32 %v1451, %v1489
        %v1498 = vadd.f32 %v1454, %v1490
        %v1499 = vadd.f32 %v1459, %v1491
        %v1500 = vadd.f32 %v1462, %v1492
        %v1501 = vadd.f32 %v1467, %v1493
        %v1502 = vadd.f32 %v1470, %v1494
        %v1503 = vadd.f32 %v1475, %v1495
        %v1504 = vadd.f32 %v1478, %v1496
        %v1505 = vpack.c.bf16 %v1498, %v1497
        %v1506 = vpack.c.bf16 %v1500, %v1499
        %v1507 = vpack.c.bf16 %v1502, %v1501
        %v1508 = vpack.c.bf16 %v1504, %v1503
        %v1509 = vld [vmem:[%s10] sm:$0xf]
        %v1510 = vld [vmem:[%s10 + $0x4] sm:$0xf]
        %v1511 = vld [vmem:[%s11] sm:$0x1]
        %v1513 = vlaneseq
        %v1514 = vshrl.u32 %v1513, 7
        %v1515 = vsub.s32 0, %v1514
        %v1516 = vrot.slane %v1511, %v1515
        %v1520 = vunpack.c.l.b16 %v1509
        %v1521 = vunpack.c.l.b16 %v1510
        %v1522 = vpack.c.b16 %v1521, %v1520
        %vm1524 = vcmask 130048
        %v1526 = vsel %vm1524, %v1505, 0
        %v1529 = vsel %vm1524, %v1506, 0
        %v1532 = vsel %vm1524, %v1507, 0
        %v1535 = vsel %vm1524, %v1508, 0
        %1537 = vmatprep.subr.bf16.mxu0 0
        %1538 = vmatpush1.bf16.msra.mxu0 0
        %1539 = vmatprep.subr.bf16.mxu0 0
        %1540 = vmatpush1.bf16.msra.mxu0 0
        %1541 = vmatprep.subr.bf16.mxu0 0
        %1542 = vmatpush1.bf16.msra.mxu0 0
        %1543 = vmatprep.subr.bf16.mxu0 0
        %1544 = vmatpush1.bf16.msra.mxu0 0
        %1545 = vmatprep.subr.bf16.mxu0 0
        %1546 = vmatpush1.bf16.msra.mxu0 0
        %1547 = vmatprep.subr.bf16.mxu0 0
        %1548 = vmatpush1.bf16.msra.mxu0 0
        %1549 = vmatprep.subr.bf16.mxu0 0
        %1550 = vmatpush1.bf16.msra.mxu0 0
        %1551 = vmatprep.subr.bf16.mxu0 0
        %1552 = vmatpush1.bf16.msra.mxu0 %v1522
        %1553 = vmatprep.subr.bf16.mxu0 0
        %1554 = vmatpush2.bf16.msra.mxu0 0
        %1555 = vmatprep.subr.bf16.mxu0 0
        %1556 = vmatpush2.bf16.msra.mxu0 0
        %1557 = vmatprep.subr.bf16.mxu0 0
        %1558 = vmatpush2.bf16.msra.mxu0 0
        %1559 = vmatprep.subr.bf16.mxu0 0
        %1560 = vmatpush2.bf16.msra.mxu0 0
        %1561 = vmatprep.subr.bf16.mxu0 0
        %1562 = vmatpush2.bf16.msra.mxu0 0
        %1563 = vmatprep.subr.bf16.mxu0 0
        %1564 = vmatpush2.bf16.msra.mxu0 0
        %1565 = vmatprep.subr.bf16.mxu0 0
        %1566 = vmatpush2.bf16.msra.mxu0 0
        %1567 = vmatprep.subr.bf16.mxu0 0
        %1568 = vmatpush2.bf16.msra.mxu0 0
        %1569 = vmatprep.mubr.bf16.mxu0 0
        %1570 = vmatmul.mubr.bf16.gmra.mxu0 %v1526
        %v1571 = vpop.f32.mrf.mxu0
        %v1572 = vadd.f32 %v1516, %v1571
        %v1573 = vpop.f32.mrf.mxu0
        %v1574 = vpop.f32.mrf.mxu0
        %v1575 = vadd.f32 %v1516, %v1574
        %v1576 = vpop.f32.mrf.mxu0
        %1577 = vmatprep.mubr.bf16.mxu0 0
        %1578 = vmatmul.mubr.bf16.gmra.mxu0 %v1529
        %v1579 = vpop.f32.mrf.mxu0
        %v1580 = vadd.f32 %v1516, %v1579
        %v1581 = vpop.f32.mrf.mxu0
        %v1582 = vpop.f32.mrf.mxu0
        %v1583 = vadd.f32 %v1516, %v1582
        %v1584 = vpop.f32.mrf.mxu0
        %1585 = vmatprep.mubr.bf16.mxu0 0
        %1586 = vmatmul.mubr.bf16.gmra.mxu0 %v1532
        %v1587 = vpop.f32.mrf.mxu0
        %v1588 = vadd.f32 %v1516, %v1587
        %v1589 = vpop.f32.mrf.mxu0
        %v1590 = vpop.f32.mrf.mxu0
        %v1591 = vadd.f32 %v1516, %v1590
        %v1592 = vpop.f32.mrf.mxu0
        %1593 = vmatprep.mubr.bf16.mxu0 0
        %1594 = vmatmul.mubr.bf16.gmra.mxu0 %v1535
        %v1595 = vpop.f32.mrf.mxu0
        %v1596 = vadd.f32 %v1516, %v1595
        %v1597 = vpop.f32.mrf.mxu0
        %v1598 = vpop.f32.mrf.mxu0
        %v1599 = vadd.f32 %v1516, %v1598
        %v1600 = vpop.f32.mrf.mxu0
        %1601 = vdwg.mxu0
        %v1602 = vxor.u32 %v1572, 2147483648
        %v1603 = vxor.u32 %v1575, 2147483648
        %v1604 = vxor.u32 %v1580, 2147483648
        %v1605 = vxor.u32 %v1583, 2147483648
        %v1606 = vxor.u32 %v1588, 2147483648
        %v1607 = vxor.u32 %v1591, 2147483648
        %v1608 = vxor.u32 %v1596, 2147483648
        %v1609 = vxor.u32 %v1599, 2147483648
        %v1610 = vmul.f32 %v1602, 1.442695
        %v1611 = vpow.pop %v1610
        %v1612 = vmul.f32 %v1603, 1.442695
        %v1613 = vpow.pop %v1612
        %v1614 = vmul.f32 %v1604, 1.442695
        %v1615 = vpow.pop %v1614
        %v1616 = vmul.f32 %v1605, 1.442695
        %v1617 = vpow.pop %v1616
        %v1618 = vmul.f32 %v1606, 1.442695
        %v1619 = vpow.pop %v1618
        %v1620 = vmul.f32 %v1607, 1.442695
        %v1621 = vpow.pop %v1620
        %v1622 = vmul.f32 %v1608, 1.442695
        %v1623 = vpow.pop %v1622
        %v1624 = vmul.f32 %v1609, 1.442695
        %v1625 = vpow.pop %v1624
        %v1626 = vadd.f32 %v1611, 1.0
        %v1627 = vadd.f32 %v1613, 1.0
        %v1628 = vadd.f32 %v1615, 1.0
        %v1629 = vadd.f32 %v1617, 1.0
        %v1630 = vadd.f32 %v1619, 1.0
        %v1631 = vadd.f32 %v1621, 1.0
        %v1632 = vadd.f32 %v1623, 1.0
        %v1633 = vadd.f32 %v1625, 1.0
        %v1634 = vrcp.pop %v1626
        %v1635 = vmul.f32 1.0, %v1634
        %v1636 = vrcp.pop %v1627
        %v1637 = vmul.f32 1.0, %v1636
        %v1638 = vrcp.pop %v1628
        %v1639 = vmul.f32 1.0, %v1638
        %v1640 = vrcp.pop %v1629
        %v1641 = vmul.f32 1.0, %v1640
        %v1642 = vrcp.pop %v1630
        %v1643 = vmul.f32 1.0, %v1642
        %v1644 = vrcp.pop %v1631
        %v1645 = vmul.f32 1.0, %v1644
        %v1646 = vrcp.pop %v1632
        %v1647 = vmul.f32 1.0, %v1646
        %v1648 = vrcp.pop %v1633
        %v1649 = vmul.f32 1.0, %v1648
        %v1650 = vmul.f32 %v1572, %v1635
        %v1651 = vmul.f32 %v1575, %v1637
        %v1652 = vmul.f32 %v1580, %v1639
        %v1653 = vmul.f32 %v1583, %v1641
        %v1654 = vmul.f32 %v1588, %v1643
        %v1655 = vmul.f32 %v1591, %v1645
        %v1656 = vmul.f32 %v1596, %v1647
        %v1657 = vmul.f32 %v1599, %v1649
        %v1658 = vsel %vm1150, %v1650, 0.0
        %v1659 = vsel %vm1150, %v1651, 0.0
        %v1660 = vadd.f32 %v1658, %v1659
        %v1661 = vsel %vm1150, %v1652, 0.0
        %v1662 = vadd.f32 %v1660, %v1661
        %v1663 = vsel %vm1150, %v1653, 0.0
        %v1664 = vadd.f32 %v1662, %v1663
        %v1665 = vsel %vm1150, %v1654, 0.0
        %v1666 = vadd.f32 %v1664, %v1665
        %v1667 = vsel %vm1150, %v1655, 0.0
        %v1668 = vadd.f32 %v1666, %v1667
        %v1669 = vsel %vm1150, %v1656, 0.0
        %v1670 = vadd.f32 %v1668, %v1669
        %v1671 = vsel %vm1150, %v1657, 0.0
        %v1672 = vadd.f32 %v1670, %v1671
        %v1673 = vrot.slane %v1672, 4
        %v1674 = vadd.f32 %v1672, %v1673
        %v1675 = vrot.slane %v1674, 2
        %v1676 = vadd.f32 %v1674, %v1675
        %v1677 = vrot.slane %v1676, 1
        %v1678 = vadd.f32 %v1676, %v1677
        %v1679 = vmul.f32 %v1678, %v1172
        %v1680 = vld [vmem:[%s12] sm:$0xff]
        %v1681 = vld [vmem:[%s12 + $0x8] sm:$0xff]
        %v1682 = vld [vmem:[%s12 + $0x10] sm:$0xff]
        %v1683 = vld [vmem:[%s12 + $0x18] sm:$0xff]
        %v1684 = vld [vmem:[%s12 + $0x20] sm:$0xff]
        %v1685 = vld [vmem:[%s12 + $0x28] sm:$0xff]
        %v1686 = vld [vmem:[%s12 + $0x30] sm:$0xff]
        %v1687 = vld [vmem:[%s12 + $0x38] sm:$0xff]
        %v1688 = vld [vmem:[%s13] sm:$0x1]
        %v1690 = vsel %vm1150, %v1679, 0
        %1692 = vmatprep.subr.mxu0 0.0
        %1693 = vmatpush1.msra.mxu0 0.0
        %1694 = vmatprep.subr.mxu0 0.0
        %1695 = vmatpush1.msra.mxu0 0.0
        %1696 = vmatprep.subr.mxu0 0.0
        %1697 = vmatpush1.msra.mxu0 0.0
        %1698 = vmatprep.subr.mxu0 0.0
        %1699 = vmatpush1.msra.mxu0 0.0
        %1700 = vmatprep.subr.mxu0 0.0
        %1701 = vmatpush1.msra.mxu0 0.0
        %1702 = vmatprep.subr.mxu0 0.0
        %1703 = vmatpush1.msra.mxu0 0.0
        %1704 = vmatprep.subr.mxu0 0.0
        %1705 = vmatpush1.msra.mxu0 0.0
        %1706 = vmatprep.subr.mxu0 0.0
        %1707 = vmatpush1.msra.mxu0 0.0
        %1708 = vmatprep.subr.mxu0 0.0
        %1709 = vmatpush1.msra.mxu0 %v1687
        %1710 = vmatprep.subr.mxu0 0.0
        %1711 = vmatpush1.msra.mxu0 %v1686
        %1712 = vmatprep.subr.mxu0 0.0
        %1713 = vmatpush1.msra.mxu0 %v1685
        %1714 = vmatprep.subr.mxu0 0.0
        %1715 = vmatpush1.msra.mxu0 %v1684
        %1716 = vmatprep.subr.mxu0 0.0
        %1717 = vmatpush1.msra.mxu0 %v1683
        %1718 = vmatprep.subr.mxu0 0.0
        %1719 = vmatpush1.msra.mxu0 %v1682
        %1720 = vmatprep.subr.mxu0 0.0
        %1721 = vmatpush1.msra.mxu0 %v1681
        %1722 = vmatprep.subr.mxu0 0.0
        %1723 = vmatpush1.msra.mxu0 %v1680
        %1724 = vmatprep.subr.mxu0 0.0
        %1725 = vmatpush2.msra.mxu0 0.0
        %1726 = vmatprep.subr.mxu0 0.0
        %1727 = vmatpush2.msra.mxu0 0.0
        %1728 = vmatprep.subr.mxu0 0.0
        %1729 = vmatpush2.msra.mxu0 0.0
        %1730 = vmatprep.subr.mxu0 0.0
        %1731 = vmatpush2.msra.mxu0 0.0
        %1732 = vmatprep.subr.mxu0 0.0
        %1733 = vmatpush2.msra.mxu0 0.0
        %1734 = vmatprep.subr.mxu0 0.0
        %1735 = vmatpush2.msra.mxu0 0.0
        %1736 = vmatprep.subr.mxu0 0.0
        %1737 = vmatpush2.msra.mxu0 0.0
        %1738 = vmatprep.subr.mxu0 0.0
        %1739 = vmatpush2.msra.mxu0 0.0
        %1740 = vmatprep.subr.mxu0 0.0
        %1741 = vmatpush2.msra.mxu0 0.0
        %1742 = vmatprep.subr.mxu0 0.0
        %1743 = vmatpush2.msra.mxu0 0.0
        %1744 = vmatprep.subr.mxu0 0.0
        %1745 = vmatpush2.msra.mxu0 0.0
        %1746 = vmatprep.subr.mxu0 0.0
        %1747 = vmatpush2.msra.mxu0 0.0
        %1748 = vmatprep.subr.mxu0 0.0
        %1749 = vmatpush2.msra.mxu0 0.0
        %1750 = vmatprep.subr.mxu0 0.0
        %1751 = vmatpush2.msra.mxu0 0.0
        %1752 = vmatprep.subr.mxu0 0.0
        %1753 = vmatpush2.msra.mxu0 0.0
        %1754 = vmatprep.subr.mxu0 0.0
        %1755 = vmatpush2.msra.mxu0 0.0
        %1756 = vmatprep.mubr.f32.mxu0 0.0
        %1757 = vmatmul.mubr.f32.gmra.mxu0 %v1690
        %v1758 = vpop.f32.mrf.mxu0
        %v1759 = vadd.f32 %v1688, %v1758
        %v1760 = vpop.f32.mrf.mxu0
        %1761 = vdwg.mxu0
        %vm1762 = vcmask 253952
        %1763 = vst.msk [vmem:[%s474] sm:$0x1] %vm1762, %v1759
        %s1764 = sand.u32 %s340, 1
        %s1765 = scalar_lea.sflag [#allocation3], %s1764
        %s1766 = sand.u32 %s340, 1
        %s1767 = scalar_lea.vmem [#allocation2], %s1766
        // Predicated region
        $region77: #{efficientnet_backbone_forward.3} parent=75 // pred_check
          %p1768 = pneg %p350
        $region78: #{efficientnet_backbone_forward.3} parent=75 // pred_check_branch
          %1770 = sbr.rel (%p1768) target = $region80
        $region79: #{efficientnet_backbone_forward.3} parent=75 // pred_region
          %s1772 = ssub.s32 16, 16
          %1773 = vsyncadd %s1765, %s1772
          %s1774 = smul.addr %s28, 16
          %s1775 = scalar_lea.hbm %s14, %s1774
          %s1777 = sshll.u32 %s1767, 4
          %s1778 = int_to_ptr.vmem [resolvable:$true] %s1777
          %1780 = dma.vmem_to_hbm [thread:$0]  %s1778, 16, %s1775, %s1765
        $region80: #{efficientnet_backbone_forward.3} parent=75 // pred_fallthru
          _
      $region76: #{efficientnet_backbone_forward.3} parent=5 // pred_fallthru
        _
      %p1781 = scmp.le.s32.totalorder 2, %s23
      // Predicated region
      $region81: #{efficientnet_backbone_forward.3} parent=5 // pred_check
        %p1782 = pneg %p1781
      $region82: #{efficientnet_backbone_forward.3} parent=5 // pred_check_branch
        %1784 = sbr.rel (%p1782) target = $region84
      $region83: #{efficientnet_backbone_forward.3} parent=5 // pred_region
        %s1785 = ssub.s32 %s23, 2
        // Predicated region
        $region85: #{efficientnet_backbone_forward.3} parent=83 // pred_check
          %p1786 = pneg %p356
        $region86: #{efficientnet_backbone_forward.3} parent=83 // pred_check_branch
          %1788 = sbr.rel (%p1786) target = $region88
        $region87: #{efficientnet_backbone_forward.3} parent=83 // pred_region
          %s1789 = sand.u32 %s341, 1
          %s1790 = scalar_lea.sflag [#allocation3], %s1789
          %s1791 = sand.u32 %s341, 1
          %s1792 = scalar_lea.vmem [#allocation2], %s1791
          %1793 = dma.done %s1790, 16
        $region88: #{efficientnet_backbone_forward.3} parent=83 // pred_fallthru
          _
      $region84: #{efficientnet_backbone_forward.3} parent=5 // pred_fallthru
        _
    $region6: #{efficientnet_backbone_forward.3} parent=1 // loop_footer
      %s27 = sadd.s32 1, %s23
    $region7: #{efficientnet_backbone_forward.3} parent=1 // loop_footer_branch
      %22 = sbr.rel target = $region3
    $region8: #{efficientnet_backbone_forward.3} parent=1 // loop_exit
      _
    %1794 = vsyncpa [#allocation3], 1
    %s1795 = scalar_lea.sflag [#allocation3], 1
    %1796 = vsyncpa %s1795, 1

</llo_original>
